<compile_context>
chip_gen: v6e
topology: v6e:2x2x1
jax: 0.10.0
libtpu: 0.0.40
codegen_flags: <defaults>
</compile_context>

<pallas_src>
import math
from functools import partial

import jax
import jax.numpy as jnp
from jax.experimental import pallas as pl
from jax.experimental.pallas import tpu as pltpu  # noqa: F401  (kept for TODOs below)


def _attention_decoder_kernel(x_ref, wqkv_ref, bqkv_ref, wo_ref, bo_ref,
                              out_ref, *, n_heads: int):
    """Whole problem in one invocation: fused QKV proj + per-head MHA + out proj."""
    B, L, D = x_ref.shape
    H = n_heads
    E = D // H
    f32 = jnp.float32

    # ---- Fused Q/K/V projection: one (B*L, D) @ (D, 3D) MXU matmul, f32 acc.
    #      (1/sqrt(E) is already folded into the Wq / bq columns wrapper-side.)
    x2 = x_ref[...].reshape(B * L, D)                       # free sublane merge
    qkv = jnp.dot(x2, wqkv_ref[...], preferred_element_type=f32)
    qkv = qkv + bqkv_ref[...]                               # (B*L, 3D) f32
    qkv = qkv.reshape(B, L, 3 * D)                          # free sublane split

    # ---- Per-head attention.  Heads are static lane slices of the lane-dense
    #      QKV slab; every contraction is rank-3 with a single leading batch
    #      dim, so there are no transposes / relayouts.  The head merge is
    #      folded into the output projection by accumulating each head's
    #      contribution against the matching (E, D) sublane slice of Wo.
    y = jnp.zeros((B * L, D), f32)
    for h in range(H):                                      # H=4, unrolled at trace time
        q_h = qkv[:, :, h * E:(h + 1) * E]                  # (B, L, E), pre-scaled
        k_h = qkv[:, :, D + h * E:D + (h + 1) * E]          # (B, S, E)
        v_h = qkv[:, :, 2 * D + h * E:2 * D + (h + 1) * E]  # (B, S, E)

        s = jnp.einsum('ble,bse->bls', q_h, k_h, preferred_element_type=f32)
        s = s - jnp.max(s, axis=-1, keepdims=True)          # stable softmax, f32
        p = jnp.exp(s)
        p = p / jnp.sum(p, axis=-1, keepdims=True)          # exact division (cheap here)

        o_h = jnp.einsum('bls,bse->ble', p, v_h, preferred_element_type=f32)
        # Head merge folded into the output projection: (B*L, E) @ (E, D).
        y = y + jnp.dot(o_h.reshape(B * L, E),
                        wo_ref[h * E:(h + 1) * E, :],
                        preferred_element_type=f32)

    y = y + bo_ref[...]                                     # (B*L, D) + (1, D)
    out_ref[...] = y.reshape(B, L, D).astype(out_ref.dtype)


def attention_decoder_pallas(x, params, n_heads):
    """x: (B, L, d_model) f32. params: (in, out)-layout weights, (1, out) biases."""
    B, L, D = x.shape
    E = D // n_heads
    scale = jnp.float32(1.0 / math.sqrt(E))

    # Fuse Q/K/V weights & biases wrapper-side (one wide lane-dense projection)
    # and fold the 1/sqrt(E) attention scale into the Q columns for free.
    wqkv = jnp.concatenate(
        [params["wq"] * scale, params["wk"], params["wv"]], axis=1).astype(jnp.float32)
    bqkv = jnp.concatenate(
        [params["bq"] * scale, params["bk"], params["bv"]], axis=1).astype(jnp.float32)
    wo = params["wo"].astype(jnp.float32)
    bo = params["bo"].astype(jnp.float32)

    # Single gridless invocation: at these sizes everything (inputs, weights,
    # output ~ a few tens of KB) lives comfortably in VMEM on v5e/v6e/v7x, and
    # any grid would be pure per-step overhead.
    # TODO(synk): for large d_model / B*L, reintroduce a grid (row tiles marked
    # "parallel", K-tiled projection marked "arbitrary" with an f32 accumulator),
    # bf16 MXU inputs, pl.Buffered(1) on the constant-index weight specs, and a
    # lane-dense output slab; all irrelevant at (B, L, D) = (2, 8, 32).
    return pl.pallas_call(
        partial(_attention_decoder_kernel, n_heads=n_heads),
        out_shape=jax.ShapeDtypeStruct((B, L, D), x.dtype),
    )(x.astype(jnp.float32), wqkv, bqkv, wo, bo)


def attention_decoder_reference(x, params, n_heads):
    """Pure-JAX f32 reference mirroring the PyTorch forward pass."""
    B, L, D = x.shape
    H = n_heads
    E = D // H
    q = (x @ params["wq"] + params["bq"][0]).reshape(B, L, H, E)
    k = (x @ params["wk"] + params["bk"][0]).reshape(B, L, H, E)
    v = (x @ params["wv"] + params["bv"][0]).reshape(B, L, H, E)
    scale = 1.0 / math.sqrt(E)
    scores = jnp.einsum("blhe,bshe->bhls", q, k) * scale
    attn = jax.nn.softmax(scores, axis=-1)
    o = jnp.einsum("bhls,bshd->blhd", attn, v).reshape(B, L, D)
    return o @ params["wo"] + params["bo"][0]


def init_params(key, d_model):
    """Deterministic synthetic parameters. Weights stored as (in, out)."""
    ks = jax.random.split(key, 8)
    s = 1.0 / math.sqrt(d_model)

    def lin(kw, kb):
        w = jax.random.uniform(kw, (d_model, d_model), jnp.float32, -s, s)
        b = jax.random.uniform(kb, (1, d_model), jnp.float32, -s, s)
        return w, b

    wq, bq = lin(ks[0], ks[1])
    wk, bk = lin(ks[2], ks[3])
    wv, bv = lin(ks[4], ks[5])
    wo, bo = lin(ks[6], ks[7])
    return dict(wq=wq, bq=bq, wk=wk, bk=bk, wv=wv, bv=bv, wo=wo, bo=bo)


if __name__ == "__main__":
    B, L, d_model, n_heads = 2, 8, 32, 4   # E = d_model // n_heads = 8

    key = jax.random.PRNGKey(0)
    kx, kp = jax.random.split(key)
    x = jax.random.normal(kx, (B, L, d_model), dtype=jnp.float32)
    params = init_params(kp, d_model)

    out = jax.block_until_ready(attention_decoder_pallas(x, params, n_heads))
    ref = attention_decoder_reference(x, params, n_heads)

    assert out.shape == (B, L, d_model)
    assert out.dtype == x.dtype
    # f32 end-to-end; tolerance only covers MXU default-precision rounding.
    assert jnp.allclose(out, ref, atol=2e-2, rtol=2e-2), "mismatch vs reference"

    print("KERNEL_OK")
</pallas_src>

<mosaic_0001>
module attributes {stable_mosaic.version = 11 : i64} {
  func.func @_attention_decoder_kernel(%arg0: memref<2x8x32xf32, #tpu.memory_space<vmem>>, %arg1: memref<32x96xf32, #tpu.memory_space<vmem>>, %arg2: memref<1x96xf32, #tpu.memory_space<vmem>>, %arg3: memref<32x32xf32, #tpu.memory_space<vmem>>, %arg4: memref<1x32xf32, #tpu.memory_space<vmem>>, %arg5: memref<2x8x32xf32, #tpu.memory_space<vmem>>) attributes {dimension_semantics = [], scalar_prefetch = 0 : i64, scratch_operands = 0 : i64, tpu.core_type = #tpu.core_type<tc>} {
    %c0 = arith.constant 0 : index
    %c0_0 = arith.constant 0 : index
    %c0_1 = arith.constant 0 : index
    %0 = vector.load %arg0[%c0, %c0_0, %c0_1] : memref<2x8x32xf32, #tpu.memory_space<vmem>>, vector<2x8x32xf32>
    %1 = vector.shape_cast %0 : vector<2x8x32xf32> to vector<16x32xf32>
    %c0_2 = arith.constant 0 : index
    %c0_3 = arith.constant 0 : index
    %2 = vector.load %arg1[%c0_2, %c0_3] : memref<32x96xf32, #tpu.memory_space<vmem>>, vector<32x96xf32>
    %cst = arith.constant dense<0.000000e+00> : vector<16x96xf32>
    %3 = tpu.matmul %1, %2, %cst {dimension_numbers = #tpu.dot_dimension_numbers<[1], [0], [0], [1], [0, 0, 1, 1], [], []>} : vector<16x32xf32>, vector<32x96xf32>, vector<16x96xf32> -> vector<16x96xf32>
    %c0_4 = arith.constant 0 : index
    %c0_5 = arith.constant 0 : index
    %4 = vector.load %arg2[%c0_4, %c0_5] : memref<1x96xf32, #tpu.memory_space<vmem>>, vector<1x96xf32>
    %5 = vector.broadcast %4 : vector<1x96xf32> to vector<16x96xf32>
    %6 = arith.addf %3, %5 : vector<16x96xf32>
    %7 = vector.shape_cast %6 : vector<16x96xf32> to vector<2x8x96xf32>
    %cst_6 = arith.constant 0.000000e+00 : f32
    %8 = vector.broadcast %cst_6 : f32 to vector<16x32xf32>
    %9 = vector.extract_strided_slice %7 {offsets = [0, 0, 0], sizes = [2, 8, 8], strides = [1, 1, 1]} : vector<2x8x96xf32> to vector<2x8x8xf32>
    %10 = vector.extract_strided_slice %7 {offsets = [0, 0, 32], sizes = [2, 8, 8], strides = [1, 1, 1]} : vector<2x8x96xf32> to vector<2x8x8xf32>
    %11 = vector.extract_strided_slice %7 {offsets = [0, 0, 64], sizes = [2, 8, 8], strides = [1, 1, 1]} : vector<2x8x96xf32> to vector<2x8x8xf32>
    "tpu.trace_start"() <{level = 10 : i32, message = "ble,bse->bls"}> : () -> ()
    %cst_7 = arith.constant dense<0.000000e+00> : vector<2x8x8xf32>
    %12 = tpu.matmul %9, %10, %cst_7 {dimension_numbers = #tpu.dot_dimension_numbers<[2], [2], [1], [1], [0, 0, 0, 1, 1, 1], [0], [0]>} : vector<2x8x8xf32>, vector<2x8x8xf32>, vector<2x8x8xf32> -> vector<2x8x8xf32>
    "tpu.trace_stop"() : () -> ()
    %cst_8 = arith.constant dense<0xFF800000> : vector<2x8xf32>
    %13 = vector.multi_reduction <maximumf>, %12, %cst_8 [2] : vector<2x8x8xf32> to vector<2x8xf32>
    %14 = vector.shape_cast %13 : vector<2x8xf32> to vector<2x8x1xf32>
    %15 = vector.broadcast %14 : vector<2x8x1xf32> to vector<2x8x8xf32>
    %16 = arith.subf %12, %15 : vector<2x8x8xf32>
    %17 = math.exp %16 : vector<2x8x8xf32>
    %cst_9 = arith.constant dense<0.000000e+00> : vector<2x8xf32>
    %18 = vector.multi_reduction <add>, %17, %cst_9 [2] : vector<2x8x8xf32> to vector<2x8xf32>
    %19 = vector.shape_cast %18 : vector<2x8xf32> to vector<2x8x1xf32>
    %20 = vector.broadcast %19 : vector<2x8x1xf32> to vector<2x8x8xf32>
    %21 = arith.divf %17, %20 : vector<2x8x8xf32>
    "tpu.trace_start"() <{level = 10 : i32, message = "bls,bse->ble"}> : () -> ()
    %cst_10 = arith.constant dense<0.000000e+00> : vector<2x8x8xf32>
    %22 = tpu.matmul %21, %11, %cst_10 {dimension_numbers = #tpu.dot_dimension_numbers<[2], [1], [1], [2], [0, 0, 0, 1, 1, 2], [0], [0]>} : vector<2x8x8xf32>, vector<2x8x8xf32>, vector<2x8x8xf32> -> vector<2x8x8xf32>
    "tpu.trace_stop"() : () -> ()
    %23 = vector.shape_cast %22 : vector<2x8x8xf32> to vector<16x8xf32>
    %c0_11 = arith.constant 0 : index
    %c0_12 = arith.constant 0 : index
    %24 = vector.load %arg3[%c0_11, %c0_12] : memref<32x32xf32, #tpu.memory_space<vmem>>, vector<8x32xf32>
    %cst_13 = arith.constant dense<0.000000e+00> : vector<16x32xf32>
    %25 = tpu.matmul %23, %24, %cst_13 {dimension_numbers = #tpu.dot_dimension_numbers<[1], [0], [0], [1], [0, 0, 1, 1], [], []>} : vector<16x8xf32>, vector<8x32xf32>, vector<16x32xf32> -> vector<16x32xf32>
    %26 = arith.addf %8, %25 : vector<16x32xf32>
    %27 = vector.extract_strided_slice %7 {offsets = [0, 0, 8], sizes = [2, 8, 8], strides = [1, 1, 1]} : vector<2x8x96xf32> to vector<2x8x8xf32>
    %28 = vector.extract_strided_slice %7 {offsets = [0, 0, 40], sizes = [2, 8, 8], strides = [1, 1, 1]} : vector<2x8x96xf32> to vector<2x8x8xf32>
    %29 = vector.extract_strided_slice %7 {offsets = [0, 0, 72], sizes = [2, 8, 8], strides = [1, 1, 1]} : vector<2x8x96xf32> to vector<2x8x8xf32>
    "tpu.trace_start"() <{level = 10 : i32, message = "ble,bse->bls"}> : () -> ()
    %cst_14 = arith.constant dense<0.000000e+00> : vector<2x8x8xf32>
    %30 = tpu.matmul %27, %28, %cst_14 {dimension_numbers = #tpu.dot_dimension_numbers<[2], [2], [1], [1], [0, 0, 0, 1, 1, 1], [0], [0]>} : vector<2x8x8xf32>, vector<2x8x8xf32>, vector<2x8x8xf32> -> vector<2x8x8xf32>
    "tpu.trace_stop"() : () -> ()
    %cst_15 = arith.constant dense<0xFF800000> : vector<2x8xf32>
    %31 = vector.multi_reduction <maximumf>, %30, %cst_15 [2] : vector<2x8x8xf32> to vector<2x8xf32>
    %32 = vector.shape_cast %31 : vector<2x8xf32> to vector<2x8x1xf32>
    %33 = vector.broadcast %32 : vector<2x8x1xf32> to vector<2x8x8xf32>
    %34 = arith.subf %30, %33 : vector<2x8x8xf32>
    %35 = math.exp %34 : vector<2x8x8xf32>
    %cst_16 = arith.constant dense<0.000000e+00> : vector<2x8xf32>
    %36 = vector.multi_reduction <add>, %35, %cst_16 [2] : vector<2x8x8xf32> to vector<2x8xf32>
    %37 = vector.shape_cast %36 : vector<2x8xf32> to vector<2x8x1xf32>
    %38 = vector.broadcast %37 : vector<2x8x1xf32> to vector<2x8x8xf32>
    %39 = arith.divf %35, %38 : vector<2x8x8xf32>
    "tpu.trace_start"() <{level = 10 : i32, message = "bls,bse->ble"}> : () -> ()
    %cst_17 = arith.constant dense<0.000000e+00> : vector<2x8x8xf32>
    %40 = tpu.matmul %39, %29, %cst_17 {dimension_numbers = #tpu.dot_dimension_numbers<[2], [1], [1], [2], [0, 0, 0, 1, 1, 2], [0], [0]>} : vector<2x8x8xf32>, vector<2x8x8xf32>, vector<2x8x8xf32> -> vector<2x8x8xf32>
    "tpu.trace_stop"() : () -> ()
    %41 = vector.shape_cast %40 : vector<2x8x8xf32> to vector<16x8xf32>
    %c8 = arith.constant 8 : index
    %c0_18 = arith.constant 0 : index
    %42 = vector.load %arg3[%c8, %c0_18] : memref<32x32xf32, #tpu.memory_space<vmem>>, vector<8x32xf32>
    %cst_19 = arith.constant dense<0.000000e+00> : vector<16x32xf32>
    %43 = tpu.matmul %41, %42, %cst_19 {dimension_numbers = #tpu.dot_dimension_numbers<[1], [0], [0], [1], [0, 0, 1, 1], [], []>} : vector<16x8xf32>, vector<8x32xf32>, vector<16x32xf32> -> vector<16x32xf32>
    %44 = arith.addf %26, %43 : vector<16x32xf32>
    %45 = vector.extract_strided_slice %7 {offsets = [0, 0, 16], sizes = [2, 8, 8], strides = [1, 1, 1]} : vector<2x8x96xf32> to vector<2x8x8xf32>
    %46 = vector.extract_strided_slice %7 {offsets = [0, 0, 48], sizes = [2, 8, 8], strides = [1, 1, 1]} : vector<2x8x96xf32> to vector<2x8x8xf32>
    %47 = vector.extract_strided_slice %7 {offsets = [0, 0, 80], sizes = [2, 8, 8], strides = [1, 1, 1]} : vector<2x8x96xf32> to vector<2x8x8xf32>
    "tpu.trace_start"() <{level = 10 : i32, message = "ble,bse->bls"}> : () -> ()
    %cst_20 = arith.constant dense<0.000000e+00> : vector<2x8x8xf32>
    %48 = tpu.matmul %45, %46, %cst_20 {dimension_numbers = #tpu.dot_dimension_numbers<[2], [2], [1], [1], [0, 0, 0, 1, 1, 1], [0], [0]>} : vector<2x8x8xf32>, vector<2x8x8xf32>, vector<2x8x8xf32> -> vector<2x8x8xf32>
    "tpu.trace_stop"() : () -> ()
    %cst_21 = arith.constant dense<0xFF800000> : vector<2x8xf32>
    %49 = vector.multi_reduction <maximumf>, %48, %cst_21 [2] : vector<2x8x8xf32> to vector<2x8xf32>
    %50 = vector.shape_cast %49 : vector<2x8xf32> to vector<2x8x1xf32>
    %51 = vector.broadcast %50 : vector<2x8x1xf32> to vector<2x8x8xf32>
    %52 = arith.subf %48, %51 : vector<2x8x8xf32>
    %53 = math.exp %52 : vector<2x8x8xf32>
    %cst_22 = arith.constant dense<0.000000e+00> : vector<2x8xf32>
    %54 = vector.multi_reduction <add>, %53, %cst_22 [2] : vector<2x8x8xf32> to vector<2x8xf32>
    %55 = vector.shape_cast %54 : vector<2x8xf32> to vector<2x8x1xf32>
    %56 = vector.broadcast %55 : vector<2x8x1xf32> to vector<2x8x8xf32>
    %57 = arith.divf %53, %56 : vector<2x8x8xf32>
    "tpu.trace_start"() <{level = 10 : i32, message = "bls,bse->ble"}> : () -> ()
    %cst_23 = arith.constant dense<0.000000e+00> : vector<2x8x8xf32>
    %58 = tpu.matmul %57, %47, %cst_23 {dimension_numbers = #tpu.dot_dimension_numbers<[2], [1], [1], [2], [0, 0, 0, 1, 1, 2], [0], [0]>} : vector<2x8x8xf32>, vector<2x8x8xf32>, vector<2x8x8xf32> -> vector<2x8x8xf32>
    "tpu.trace_stop"() : () -> ()
    %59 = vector.shape_cast %58 : vector<2x8x8xf32> to vector<16x8xf32>
    %c16 = arith.constant 16 : index
    %c0_24 = arith.constant 0 : index
    %60 = vector.load %arg3[%c16, %c0_24] : memref<32x32xf32, #tpu.memory_space<vmem>>, vector<8x32xf32>
    %cst_25 = arith.constant dense<0.000000e+00> : vector<16x32xf32>
    %61 = tpu.matmul %59, %60, %cst_25 {dimension_numbers = #tpu.dot_dimension_numbers<[1], [0], [0], [1], [0, 0, 1, 1], [], []>} : vector<16x8xf32>, vector<8x32xf32>, vector<16x32xf32> -> vector<16x32xf32>
    %62 = arith.addf %44, %61 : vector<16x32xf32>
    %63 = vector.extract_strided_slice %7 {offsets = [0, 0, 24], sizes = [2, 8, 8], strides = [1, 1, 1]} : vector<2x8x96xf32> to vector<2x8x8xf32>
    %64 = vector.extract_strided_slice %7 {offsets = [0, 0, 56], sizes = [2, 8, 8], strides = [1, 1, 1]} : vector<2x8x96xf32> to vector<2x8x8xf32>
    %65 = vector.extract_strided_slice %7 {offsets = [0, 0, 88], sizes = [2, 8, 8], strides = [1, 1, 1]} : vector<2x8x96xf32> to vector<2x8x8xf32>
    "tpu.trace_start"() <{level = 10 : i32, message = "ble,bse->bls"}> : () -> ()
    %cst_26 = arith.constant dense<0.000000e+00> : vector<2x8x8xf32>
    %66 = tpu.matmul %63, %64, %cst_26 {dimension_numbers = #tpu.dot_dimension_numbers<[2], [2], [1], [1], [0, 0, 0, 1, 1, 1], [0], [0]>} : vector<2x8x8xf32>, vector<2x8x8xf32>, vector<2x8x8xf32> -> vector<2x8x8xf32>
    "tpu.trace_stop"() : () -> ()
    %cst_27 = arith.constant dense<0xFF800000> : vector<2x8xf32>
    %67 = vector.multi_reduction <maximumf>, %66, %cst_27 [2] : vector<2x8x8xf32> to vector<2x8xf32>
    %68 = vector.shape_cast %67 : vector<2x8xf32> to vector<2x8x1xf32>
    %69 = vector.broadcast %68 : vector<2x8x1xf32> to vector<2x8x8xf32>
    %70 = arith.subf %66, %69 : vector<2x8x8xf32>
    %71 = math.exp %70 : vector<2x8x8xf32>
    %cst_28 = arith.constant dense<0.000000e+00> : vector<2x8xf32>
    %72 = vector.multi_reduction <add>, %71, %cst_28 [2] : vector<2x8x8xf32> to vector<2x8xf32>
    %73 = vector.shape_cast %72 : vector<2x8xf32> to vector<2x8x1xf32>
    %74 = vector.broadcast %73 : vector<2x8x1xf32> to vector<2x8x8xf32>
    %75 = arith.divf %71, %74 : vector<2x8x8xf32>
    "tpu.trace_start"() <{level = 10 : i32, message = "bls,bse->ble"}> : () -> ()
    %cst_29 = arith.constant dense<0.000000e+00> : vector<2x8x8xf32>
    %76 = tpu.matmul %75, %65, %cst_29 {dimension_numbers = #tpu.dot_dimension_numbers<[2], [1], [1], [2], [0, 0, 0, 1, 1, 2], [0], [0]>} : vector<2x8x8xf32>, vector<2x8x8xf32>, vector<2x8x8xf32> -> vector<2x8x8xf32>
    "tpu.trace_stop"() : () -> ()
    %77 = vector.shape_cast %76 : vector<2x8x8xf32> to vector<16x8xf32>
    %c24 = arith.constant 24 : index
    %c0_30 = arith.constant 0 : index
    %78 = vector.load %arg3[%c24, %c0_30] : memref<32x32xf32, #tpu.memory_space<vmem>>, vector<8x32xf32>
    %cst_31 = arith.constant dense<0.000000e+00> : vector<16x32xf32>
    %79 = tpu.matmul %77, %78, %cst_31 {dimension_numbers = #tpu.dot_dimension_numbers<[1], [0], [0], [1], [0, 0, 1, 1], [], []>} : vector<16x8xf32>, vector<8x32xf32>, vector<16x32xf32> -> vector<16x32xf32>
    %80 = arith.addf %62, %79 : vector<16x32xf32>
    %c0_32 = arith.constant 0 : index
    %c0_33 = arith.constant 0 : index
    %81 = vector.load %arg4[%c0_32, %c0_33] : memref<1x32xf32, #tpu.memory_space<vmem>>, vector<1x32xf32>
    %82 = vector.broadcast %81 : vector<1x32xf32> to vector<16x32xf32>
    %83 = arith.addf %80, %82 : vector<16x32xf32>
    %84 = vector.shape_cast %83 : vector<16x32xf32> to vector<2x8x32xf32>
    %c0_34 = arith.constant 0 : index
    %c0_35 = arith.constant 0 : index
    %c0_36 = arith.constant 0 : index
    %85 = vector.load %arg5[%c0_34, %c0_35, %c0_36] : memref<2x8x32xf32, #tpu.memory_space<vmem>>, vector<2x8x32xf32>
    tpu.vector_store %arg5[%c0_34, %c0_35, %c0_36], %84 {strides = array<i32>} : memref<2x8x32xf32, #tpu.memory_space<vmem>>, vector<2x8x32xf32>,
    return
  }
}

</mosaic_0001>

<llo_original>
// kernel: tpu_custom_call.1
$region0: #{tpu_custom_call.1}
  #allocation0 [shape = 'u32[]', space=smem, size = 0x4, offset = 0x4, fixed_abs, tag = 'smem constant byte address 0x4 - core index']
  #allocation1 [shape = 'u32[144,128]{1,0:T(1,128)}', space=vmem, size = 0x12000, scoped, tag = 'internal scratch']
  %s0 = inlined_call_operand.hbm [shape: f32[2,8,32], index: 0, kind: input, shape index: {}]
  %s1 = inlined_call_operand.hbm [shape: f32[32,96], index: 1, kind: input, shape index: {}]
  %s2 = inlined_call_operand.vmem [shape: f32[1,96], index: 2, kind: input, shape index: {}]
  %s3 = inlined_call_operand.hbm [shape: f32[32,32], index: 3, kind: input, shape index: {}]
  %s4 = inlined_call_operand.vmem [shape: f32[1,32], index: 4, kind: input, shape index: {}]
  %s5 = inlined_call_operand.hbm [shape: f32[2,8,32], index: 5, kind: output, shape index: {}]
  %s6 = sld [smem:[#allocation0]]
  $region42: #{tpu_custom_call.1} parent=0
    _
  %s8 = ssub.s32 1, %s6
  %s9 = scalar_select 0, %s8, %s6
  $region1: #{tpu_custom_call.1} parent=0
    #allocation2 [shape = 'u8[8192]{0}', space=vmem, size = 0x2000, scoped, tag = 'input window, operand 0, single buffered']
    #allocation3 [shape = 's32[1]{0}', space=sflag, size = 0x4, scoped, tag = 'scoped memory for tpu_custom_call.1']
    #allocation4 [shape = 's32[1]{0}', space=sflag, size = 0x4, scoped, tag = 'scoped memory for tpu_custom_call.1']
    #allocation5 [shape = 'u8[16384]{0}', space=vmem, size = 0x4000, scoped, tag = 'input window, operand 1, single buffered']
    #allocation6 [shape = 's32[1]{0}', space=sflag, size = 0x4, scoped, tag = 'scoped memory for tpu_custom_call.1']
    #allocation7 [shape = 'u8[16384]{0}', space=vmem, size = 0x4000, scoped, tag = 'input window, operand 3, single buffered']
    #allocation8 [shape = 'u8[8192]{0}', space=vmem, size = 0x2000, scoped, tag = 'output window, operand 0, single buffered']
    %10 = vsyncpa [#allocation3], 0
    %11 = vsyncpa [#allocation6], 0
    %12 = vsyncpa [#allocation4], 0
    // Predicated region
    $region2: #{tpu_custom_call.1} parent=1 // pred_check
      _
    $region3: #{tpu_custom_call.1} parent=1 // pred_check_branch
      %14 = sbr.rel (0) target = $region5
    $region4: #{tpu_custom_call.1} parent=1 // pred_region
      %s16 = ssub.s32 256, 256
      %17 = vsyncadd [#allocation3], %s16
      %s18 = sshll.u32 [#allocation2], 4
      %s19 = int_to_ptr.vmem [resolvable:$true] %s18
      %24 = dma.hbm_to_vmem [thread:$0]  %s0, 256, %s19, [#allocation3], 128, 128, 8
    $region5: #{tpu_custom_call.1} parent=1 // pred_fallthru
      _
    // Predicated region
    $region6: #{tpu_custom_call.1} parent=1 // pred_check
      _
    $region7: #{tpu_custom_call.1} parent=1 // pred_check_branch
      %26 = sbr.rel (0) target = $region9
    $region8: #{tpu_custom_call.1} parent=1 // pred_region
      %s28 = ssub.s32 512, 512
      %29 = vsyncadd [#allocation6], %s28
      %s30 = sshll.u32 [#allocation5], 4
      %s31 = int_to_ptr.vmem [resolvable:$true] %s30
      %36 = dma.hbm_to_vmem [thread:$0]  %s1, 512, %s31, [#allocation6], 128, 128, 8
    $region9: #{tpu_custom_call.1} parent=1 // pred_fallthru
      _
    // Predicated region
    $region10: #{tpu_custom_call.1} parent=1 // pred_check
      _
    $region11: #{tpu_custom_call.1} parent=1 // pred_check_branch
      %38 = sbr.rel (0) target = $region13
    $region12: #{tpu_custom_call.1} parent=1 // pred_region
      _
    $region13: #{tpu_custom_call.1} parent=1 // pred_fallthru
      _
    // Predicated region
    $region14: #{tpu_custom_call.1} parent=1 // pred_check
      _
    $region15: #{tpu_custom_call.1} parent=1 // pred_check_branch
      %40 = sbr.rel (0) target = $region17
    $region16: #{tpu_custom_call.1} parent=1 // pred_region
      %s42 = ssub.s32 512, 512
      %43 = vsyncadd [#allocation6], %s42
      %s44 = sshll.u32 [#allocation7], 4
      %s45 = int_to_ptr.vmem [resolvable:$true] %s44
      %50 = dma.hbm_to_vmem [thread:$0]  %s3, 512, %s45, [#allocation6], 128, 128, 8
    $region17: #{tpu_custom_call.1} parent=1 // pred_fallthru
      _
    // Predicated region
    $region18: #{tpu_custom_call.1} parent=1 // pred_check
      _
    $region19: #{tpu_custom_call.1} parent=1 // pred_check_branch
      %52 = sbr.rel (0) target = $region21
    $region20: #{tpu_custom_call.1} parent=1 // pred_region
      _
    $region21: #{tpu_custom_call.1} parent=1 // pred_fallthru
      _
    // Predicated region
    $region22: #{tpu_custom_call.1} parent=1 // pred_check
      _
    $region23: #{tpu_custom_call.1} parent=1 // pred_check_branch
      %54 = sbr.rel (0) target = $region25
    $region24: #{tpu_custom_call.1} parent=1 // pred_region
      %55 = dma.done [#allocation3], 256
    $region25: #{tpu_custom_call.1} parent=1 // pred_fallthru
      _
    // Predicated region
    $region26: #{tpu_custom_call.1} parent=1 // pred_check
      _
    $region27: #{tpu_custom_call.1} parent=1 // pred_check_branch
      %57 = sbr.rel (0) target = $region29
    $region28: #{tpu_custom_call.1} parent=1 // pred_region
      %58 = dma.done [#allocation6], 512
    $region29: #{tpu_custom_call.1} parent=1 // pred_fallthru
      _
    // Predicated region
    $region30: #{tpu_custom_call.1} parent=1 // pred_check
      _
    $region31: #{tpu_custom_call.1} parent=1 // pred_check_branch
      %60 = sbr.rel (0) target = $region33
    $region32: #{tpu_custom_call.1} parent=1 // pred_region
      %61 = dma.done [#allocation6], 512
    $region33: #{tpu_custom_call.1} parent=1 // pred_fallthru
      _
    %v62 = vld [vmem:[#allocation2] sm:$0xff]
    %v63 = vld [vmem:[#allocation2 + $0x8] sm:$0xff]
    %v64 = vld [vmem:[#allocation5] sm:$0xff]
    %v65 = vld [vmem:[#allocation5 + $0x8] sm:$0xff]
    %v66 = vld [vmem:[#allocation5 + $0x10] sm:$0xff]
    %v67 = vld [vmem:[#allocation5 + $0x18] sm:$0xff]
    %v68 = vld [vmem:[%s2] sm:$0x1]
    %v70 = vlaneseq
    %v71 = vshrl.u32 %v70, 7
    %v72 = vsub.s32 0, %v71
    %v73 = vrot.slane %v68, %v72
    %vm75 = vcmask 261120
    %v77 = vsel %vm75, %v62, 0
    %v80 = vsel %vm75, %v63, 0
    %82 = vmatprep.subr.mxu0 0.0
    %83 = vmatpush1.msra.mxu0 0.0
    %84 = vmatprep.subr.mxu0 0.0
    %85 = vmatpush1.msra.mxu0 0.0
    %86 = vmatprep.subr.mxu0 0.0
    %87 = vmatpush1.msra.mxu0 0.0
    %88 = vmatprep.subr.mxu0 0.0
    %89 = vmatpush1.msra.mxu0 0.0
    %90 = vmatprep.subr.mxu0 0.0
    %91 = vmatpush1.msra.mxu0 0.0
    %92 = vmatprep.subr.mxu0 0.0
    %93 = vmatpush1.msra.mxu0 0.0
    %94 = vmatprep.subr.mxu0 0.0
    %95 = vmatpush1.msra.mxu0 0.0
    %96 = vmatprep.subr.mxu0 0.0
    %97 = vmatpush1.msra.mxu0 0.0
    %98 = vmatprep.subr.mxu0 0.0
    %99 = vmatpush1.msra.mxu0 0.0
    %100 = vmatprep.subr.mxu0 0.0
    %101 = vmatpush1.msra.mxu0 0.0
    %102 = vmatprep.subr.mxu0 0.0
    %103 = vmatpush1.msra.mxu0 0.0
    %104 = vmatprep.subr.mxu0 0.0
    %105 = vmatpush1.msra.mxu0 0.0
    %106 = vmatprep.subr.mxu0 0.0
    %107 = vmatpush1.msra.mxu0 %v67
    %108 = vmatprep.subr.mxu0 0.0
    %109 = vmatpush1.msra.mxu0 %v66
    %110 = vmatprep.subr.mxu0 0.0
    %111 = vmatpush1.msra.mxu0 %v65
    %112 = vmatprep.subr.mxu0 0.0
    %113 = vmatpush1.msra.mxu0 %v64
    %114 = vmatprep.subr.mxu0 0.0
    %115 = vmatpush2.msra.mxu0 0.0
    %116 = vmatprep.subr.mxu0 0.0
    %117 = vmatpush2.msra.mxu0 0.0
    %118 = vmatprep.subr.mxu0 0.0
    %119 = vmatpush2.msra.mxu0 0.0
    %120 = vmatprep.subr.mxu0 0.0
    %121 = vmatpush2.msra.mxu0 0.0
    %122 = vmatprep.subr.mxu0 0.0
    %123 = vmatpush2.msra.mxu0 0.0
    %124 = vmatprep.subr.mxu0 0.0
    %125 = vmatpush2.msra.mxu0 0.0
    %126 = vmatprep.subr.mxu0 0.0
    %127 = vmatpush2.msra.mxu0 0.0
    %128 = vmatprep.subr.mxu0 0.0
    %129 = vmatpush2.msra.mxu0 0.0
    %130 = vmatprep.subr.mxu0 0.0
    %131 = vmatpush2.msra.mxu0 0.0
    %132 = vmatprep.subr.mxu0 0.0
    %133 = vmatpush2.msra.mxu0 0.0
    %134 = vmatprep.subr.mxu0 0.0
    %135 = vmatpush2.msra.mxu0 0.0
    %136 = vmatprep.subr.mxu0 0.0
    %137 = vmatpush2.msra.mxu0 0.0
    %138 = vmatprep.subr.mxu0 0.0
    %139 = vmatpush2.msra.mxu0 0.0
    %140 = vmatprep.subr.mxu0 0.0
    %141 = vmatpush2.msra.mxu0 0.0
    %142 = vmatprep.subr.mxu0 0.0
    %143 = vmatpush2.msra.mxu0 0.0
    %144 = vmatprep.subr.mxu0 0.0
    %145 = vmatpush2.msra.mxu0 0.0
    %146 = vmatprep.mubr.f32.mxu0 0.0
    %147 = vmatmul.mubr.f32.gmra.mxu0 %v77
    %v148 = vpop.f32.mrf.mxu0
    %v149 = vadd.f32 %v73, %v148
    %v150 = vpop.f32.mrf.mxu0
    %151 = vmatprep.mubr.f32.mxu0 0.0
    %152 = vmatmul.mubr.f32.gmra.mxu0 %v80
    %v153 = vpop.f32.mrf.mxu0
    %v154 = vadd.f32 %v73, %v153
    %v155 = vpop.f32.mrf.mxu0
    %156 = vdwg.mxu0
    %158 = vrot.lane.b32.xlu0 %v149, 96
    %v159 = vpop.permute.xlu0 %158
    %vm160 = vcmask 64512
    %v161 = vsel %vm160, %v149, 0
    %v163 = vsel %vm160, %v159, 0
    %165 = vmatprep.subr.mxu0 0.0
    %166 = vmatpush1.xpose.msra.mxu0 0.0
    %167 = vmatprep.subr.mxu0 0.0
    %168 = vmatpush1.xpose.msra.mxu0 0.0
    %169 = vmatprep.subr.mxu0 0.0
    %170 = vmatpush1.xpose.msra.mxu0 0.0
    %171 = vmatprep.subr.mxu0 0.0
    %172 = vmatpush1.xpose.msra.mxu0 0.0
    %173 = vmatprep.subr.mxu0 0.0
    %174 = vmatpush1.xpose.msra.mxu0 0.0
    %175 = vmatprep.subr.mxu0 0.0
    %176 = vmatpush1.xpose.msra.mxu0 0.0
    %177 = vmatprep.subr.mxu0 0.0
    %178 = vmatpush1.xpose.msra.mxu0 0.0
    %179 = vmatprep.subr.mxu0 0.0
    %180 = vmatpush1.xpose.msra.mxu0 0.0
    %181 = vmatprep.subr.mxu0 0.0
    %182 = vmatpush1.xpose.msra.mxu0 0.0
    %183 = vmatprep.subr.mxu0 0.0
    %184 = vmatpush1.xpose.msra.mxu0 0.0
    %185 = vmatprep.subr.mxu0 0.0
    %186 = vmatpush1.xpose.msra.mxu0 0.0
    %187 = vmatprep.subr.mxu0 0.0
    %188 = vmatpush1.xpose.msra.mxu0 0.0
    %189 = vmatprep.subr.mxu0 0.0
    %190 = vmatpush1.xpose.msra.mxu0 0.0
    %191 = vmatprep.subr.mxu0 0.0
    %192 = vmatpush1.xpose.msra.mxu0 0.0
    %193 = vmatprep.subr.mxu0 0.0
    %194 = vmatpush1.xpose.msra.mxu0 0.0
    %195 = vmatprep.subr.mxu0 0.0
    %196 = vmatpush1.xpose.msra.mxu0 %v163
    %197 = vmatprep.subr.mxu0 0.0
    %198 = vmatpush2.xpose.msra.mxu0 0.0
    %199 = vmatprep.subr.mxu0 0.0
    %200 = vmatpush2.xpose.msra.mxu0 0.0
    %201 = vmatprep.subr.mxu0 0.0
    %202 = vmatpush2.xpose.msra.mxu0 0.0
    %203 = vmatprep.subr.mxu0 0.0
    %204 = vmatpush2.xpose.msra.mxu0 0.0
    %205 = vmatprep.subr.mxu0 0.0
    %206 = vmatpush2.xpose.msra.mxu0 0.0
    %207 = vmatprep.subr.mxu0 0.0
    %208 = vmatpush2.xpose.msra.mxu0 0.0
    %209 = vmatprep.subr.mxu0 0.0
    %210 = vmatpush2.xpose.msra.mxu0 0.0
    %211 = vmatprep.subr.mxu0 0.0
    %212 = vmatpush2.xpose.msra.mxu0 0.0
    %213 = vmatprep.subr.mxu0 0.0
    %214 = vmatpush2.xpose.msra.mxu0 0.0
    %215 = vmatprep.subr.mxu0 0.0
    %216 = vmatpush2.xpose.msra.mxu0 0.0
    %217 = vmatprep.subr.mxu0 0.0
    %218 = vmatpush2.xpose.msra.mxu0 0.0
    %219 = vmatprep.subr.mxu0 0.0
    %220 = vmatpush2.xpose.msra.mxu0 0.0
    %221 = vmatprep.subr.mxu0 0.0
    %222 = vmatpush2.xpose.msra.mxu0 0.0
    %223 = vmatprep.subr.mxu0 0.0
    %224 = vmatpush2.xpose.msra.mxu0 0.0
    %225 = vmatprep.subr.mxu0 0.0
    %226 = vmatpush2.xpose.msra.mxu0 0.0
    %227 = vmatprep.subr.mxu0 0.0
    %228 = vmatpush2.xpose.msra.mxu0 0.0
    %229 = vmatprep.mubr.f32.mxu0 0.0
    %230 = vmatmul.mubr.f32.gmra.mxu0 %v161
    %v231 = vpop.f32.mrf.mxu0
    %v232 = vadd.f32 0.0, %v231
    %v233 = vpop.f32.mrf.mxu0
    %234 = vdwg.mxu0
    %236 = vrot.lane.b32.xlu0 %v154, 96
    %v237 = vpop.permute.xlu0 %236
    %v238 = vsel %vm160, %v154, 0
    %v240 = vsel %vm160, %v237, 0
    %242 = vmatprep.subr.mxu0 0.0
    %243 = vmatpush1.xpose.msra.mxu0 0.0
    %244 = vmatprep.subr.mxu0 0.0
    %245 = vmatpush1.xpose.msra.mxu0 0.0
    %246 = vmatprep.subr.mxu0 0.0
    %247 = vmatpush1.xpose.msra.mxu0 0.0
    %248 = vmatprep.subr.mxu0 0.0
    %249 = vmatpush1.xpose.msra.mxu0 0.0
    %250 = vmatprep.subr.mxu0 0.0
    %251 = vmatpush1.xpose.msra.mxu0 0.0
    %252 = vmatprep.subr.mxu0 0.0
    %253 = vmatpush1.xpose.msra.mxu0 0.0
    %254 = vmatprep.subr.mxu0 0.0
    %255 = vmatpush1.xpose.msra.mxu0 0.0
    %256 = vmatprep.subr.mxu0 0.0
    %257 = vmatpush1.xpose.msra.mxu0 0.0
    %258 = vmatprep.subr.mxu0 0.0
    %259 = vmatpush1.xpose.msra.mxu0 0.0
    %260 = vmatprep.subr.mxu0 0.0
    %261 = vmatpush1.xpose.msra.mxu0 0.0
    %262 = vmatprep.subr.mxu0 0.0
    %263 = vmatpush1.xpose.msra.mxu0 0.0
    %264 = vmatprep.subr.mxu0 0.0
    %265 = vmatpush1.xpose.msra.mxu0 0.0
    %266 = vmatprep.subr.mxu0 0.0
    %267 = vmatpush1.xpose.msra.mxu0 0.0
    %268 = vmatprep.subr.mxu0 0.0
    %269 = vmatpush1.xpose.msra.mxu0 0.0
    %270 = vmatprep.subr.mxu0 0.0
    %271 = vmatpush1.xpose.msra.mxu0 0.0
    %272 = vmatprep.subr.mxu0 0.0
    %273 = vmatpush1.xpose.msra.mxu0 %v240
    %274 = vmatprep.subr.mxu0 0.0
    %275 = vmatpush2.xpose.msra.mxu0 0.0
    %276 = vmatprep.subr.mxu0 0.0
    %277 = vmatpush2.xpose.msra.mxu0 0.0
    %278 = vmatprep.subr.mxu0 0.0
    %279 = vmatpush2.xpose.msra.mxu0 0.0
    %280 = vmatprep.subr.mxu0 0.0
    %281 = vmatpush2.xpose.msra.mxu0 0.0
    %282 = vmatprep.subr.mxu0 0.0
    %283 = vmatpush2.xpose.msra.mxu0 0.0
    %284 = vmatprep.subr.mxu0 0.0
    %285 = vmatpush2.xpose.msra.mxu0 0.0
    %286 = vmatprep.subr.mxu0 0.0
    %287 = vmatpush2.xpose.msra.mxu0 0.0
    %288 = vmatprep.subr.mxu0 0.0
    %289 = vmatpush2.xpose.msra.mxu0 0.0
    %290 = vmatprep.subr.mxu0 0.0
    %291 = vmatpush2.xpose.msra.mxu0 0.0
    %292 = vmatprep.subr.mxu0 0.0
    %293 = vmatpush2.xpose.msra.mxu0 0.0
    %294 = vmatprep.subr.mxu0 0.0
    %295 = vmatpush2.xpose.msra.mxu0 0.0
    %296 = vmatprep.subr.mxu0 0.0
    %297 = vmatpush2.xpose.msra.mxu0 0.0
    %298 = vmatprep.subr.mxu0 0.0
    %299 = vmatpush2.xpose.msra.mxu0 0.0
    %300 = vmatprep.subr.mxu0 0.0
    %301 = vmatpush2.xpose.msra.mxu0 0.0
    %302 = vmatprep.subr.mxu0 0.0
    %303 = vmatpush2.xpose.msra.mxu0 0.0
    %304 = vmatprep.subr.mxu0 0.0
    %305 = vmatpush2.xpose.msra.mxu0 0.0
    %306 = vmatprep.mubr.f32.mxu0 0.0
    %307 = vmatmul.mubr.f32.gmra.mxu0 %v238
    %v308 = vpop.f32.mrf.mxu0
    %v309 = vadd.f32 0.0, %v308
    %v310 = vpop.f32.mrf.mxu0
    %311 = vdwg.mxu0
    %v312 = vsel %vm160, %v232, -inf
    %313 = vmax.xlane.f32.xlu0 %v312
    %v314 = vpop.xlane.xlu0 %313
    %v315 = vsel %vm160, %v309, -inf
    %316 = vmax.xlane.f32.xlu0 %v315
    %v317 = vpop.xlane.xlu0 %316
    %v318 = vsub.f32 %v232, %v314
    %v319 = vsub.f32 %v309, %v317
    %v320 = vmul.f32 %v318, 1.442695
    %v321 = vpow.pop %v320
    %v322 = vmul.f32 %v319, 1.442695
    %v323 = vpow.pop %v322
    %v324 = vsel %vm160, %v321, 0.0
    %325 = vadd.xlane.f32.xlu0 %v324
    %v326 = vpop.xlane.xlu0 %325
    %v327 = vsel %vm160, %v323, 0.0
    %328 = vadd.xlane.f32.xlu0 %v327
    %v329 = vpop.xlane.xlu0 %328
    %v330 = vrcp.pop %v326
    %v331 = vmul.f32 %v321, %v330
    %v332 = vrcp.pop %v329
    %v333 = vmul.f32 %v323, %v332
    %334 = vrot.lane.b32.xlu0 %v149, 64
    %v335 = vpop.permute.xlu0 %334
    %v338 = vsel %vm160, %v331, 0
    %340 = vmatprep.subr.mxu0 0.0
    %341 = vmatpush1.msra.mxu0 0.0
    %342 = vmatprep.subr.mxu0 0.0
    %343 = vmatpush1.msra.mxu0 0.0
    %344 = vmatprep.subr.mxu0 0.0
    %345 = vmatpush1.msra.mxu0 0.0
    %346 = vmatprep.subr.mxu0 0.0
    %347 = vmatpush1.msra.mxu0 0.0
    %348 = vmatprep.subr.mxu0 0.0
    %349 = vmatpush1.msra.mxu0 0.0
    %350 = vmatprep.subr.mxu0 0.0
    %351 = vmatpush1.msra.mxu0 0.0
    %352 = vmatprep.subr.mxu0 0.0
    %353 = vmatpush1.msra.mxu0 0.0
    %354 = vmatprep.subr.mxu0 0.0
    %355 = vmatpush1.msra.mxu0 0.0
    %356 = vmatprep.subr.mxu0 0.0
    %357 = vmatpush1.msra.mxu0 0.0
    %358 = vmatprep.subr.mxu0 0.0
    %359 = vmatpush1.msra.mxu0 0.0
    %360 = vmatprep.subr.mxu0 0.0
    %361 = vmatpush1.msra.mxu0 0.0
    %362 = vmatprep.subr.mxu0 0.0
    %363 = vmatpush1.msra.mxu0 0.0
    %364 = vmatprep.subr.mxu0 0.0
    %365 = vmatpush1.msra.mxu0 0.0
    %366 = vmatprep.subr.mxu0 0.0
    %367 = vmatpush1.msra.mxu0 0.0
    %368 = vmatprep.subr.mxu0 0.0
    %369 = vmatpush1.msra.mxu0 0.0
    %370 = vmatprep.subr.mxu0 0.0
    %371 = vmatpush1.msra.mxu0 %v335
    %372 = vmatprep.subr.mxu0 0.0
    %373 = vmatpush2.msra.mxu0 0.0
    %374 = vmatprep.subr.mxu0 0.0
    %375 = vmatpush2.msra.mxu0 0.0
    %376 = vmatprep.subr.mxu0 0.0
    %377 = vmatpush2.msra.mxu0 0.0
    %378 = vmatprep.subr.mxu0 0.0
    %379 = vmatpush2.msra.mxu0 0.0
    %380 = vmatprep.subr.mxu0 0.0
    %381 = vmatpush2.msra.mxu0 0.0
    %382 = vmatprep.subr.mxu0 0.0
    %383 = vmatpush2.msra.mxu0 0.0
    %384 = vmatprep.subr.mxu0 0.0
    %385 = vmatpush2.msra.mxu0 0.0
    %386 = vmatprep.subr.mxu0 0.0
    %387 = vmatpush2.msra.mxu0 0.0
    %388 = vmatprep.subr.mxu0 0.0
    %389 = vmatpush2.msra.mxu0 0.0
    %390 = vmatprep.subr.mxu0 0.0
    %391 = vmatpush2.msra.mxu0 0.0
    %392 = vmatprep.subr.mxu0 0.0
    %393 = vmatpush2.msra.mxu0 0.0
    %394 = vmatprep.subr.mxu0 0.0
    %395 = vmatpush2.msra.mxu0 0.0
    %396 = vmatprep.subr.mxu0 0.0
    %397 = vmatpush2.msra.mxu0 0.0
    %398 = vmatprep.subr.mxu0 0.0
    %399 = vmatpush2.msra.mxu0 0.0
    %400 = vmatprep.subr.mxu0 0.0
    %401 = vmatpush2.msra.mxu0 0.0
    %402 = vmatprep.subr.mxu0 0.0
    %403 = vmatpush2.msra.mxu0 0.0
    %404 = vmatprep.mubr.f32.mxu0 0.0
    %405 = vmatmul.mubr.f32.gmra.mxu0 %v338
    %v406 = vpop.f32.mrf.mxu0
    %v407 = vadd.f32 0.0, %v406
    %v408 = vpop.f32.mrf.mxu0
    %409 = vdwg.mxu0
    %410 = vrot.lane.b32.xlu0 %v154, 64
    %v411 = vpop.permute.xlu0 %410
    %v414 = vsel %vm160, %v333, 0
    %416 = vmatprep.subr.mxu0 0.0
    %417 = vmatpush1.msra.mxu0 0.0
    %418 = vmatprep.subr.mxu0 0.0
    %419 = vmatpush1.msra.mxu0 0.0
    %420 = vmatprep.subr.mxu0 0.0
    %421 = vmatpush1.msra.mxu0 0.0
    %422 = vmatprep.subr.mxu0 0.0
    %423 = vmatpush1.msra.mxu0 0.0
    %424 = vmatprep.subr.mxu0 0.0
    %425 = vmatpush1.msra.mxu0 0.0
    %426 = vmatprep.subr.mxu0 0.0
    %427 = vmatpush1.msra.mxu0 0.0
    %428 = vmatprep.subr.mxu0 0.0
    %429 = vmatpush1.msra.mxu0 0.0
    %430 = vmatprep.subr.mxu0 0.0
    %431 = vmatpush1.msra.mxu0 0.0
    %432 = vmatprep.subr.mxu0 0.0
    %433 = vmatpush1.msra.mxu0 0.0
    %434 = vmatprep.subr.mxu0 0.0
    %435 = vmatpush1.msra.mxu0 0.0
    %436 = vmatprep.subr.mxu0 0.0
    %437 = vmatpush1.msra.mxu0 0.0
    %438 = vmatprep.subr.mxu0 0.0
    %439 = vmatpush1.msra.mxu0 0.0
    %440 = vmatprep.subr.mxu0 0.0
    %441 = vmatpush1.msra.mxu0 0.0
    %442 = vmatprep.subr.mxu0 0.0
    %443 = vmatpush1.msra.mxu0 0.0
    %444 = vmatprep.subr.mxu0 0.0
    %445 = vmatpush1.msra.mxu0 0.0
    %446 = vmatprep.subr.mxu0 0.0
    %447 = vmatpush1.msra.mxu0 %v411
    %448 = vmatprep.subr.mxu0 0.0
    %449 = vmatpush2.msra.mxu0 0.0
    %450 = vmatprep.subr.mxu0 0.0
    %451 = vmatpush2.msra.mxu0 0.0
    %452 = vmatprep.subr.mxu0 0.0
    %453 = vmatpush2.msra.mxu0 0.0
    %454 = vmatprep.subr.mxu0 0.0
    %455 = vmatpush2.msra.mxu0 0.0
    %456 = vmatprep.subr.mxu0 0.0
    %457 = vmatpush2.msra.mxu0 0.0
    %458 = vmatprep.subr.mxu0 0.0
    %459 = vmatpush2.msra.mxu0 0.0
    %460 = vmatprep.subr.mxu0 0.0
    %461 = vmatpush2.msra.mxu0 0.0
    %462 = vmatprep.subr.mxu0 0.0
    %463 = vmatpush2.msra.mxu0 0.0
    %464 = vmatprep.subr.mxu0 0.0
    %465 = vmatpush2.msra.mxu0 0.0
    %466 = vmatprep.subr.mxu0 0.0
    %467 = vmatpush2.msra.mxu0 0.0
    %468 = vmatprep.subr.mxu0 0.0
    %469 = vmatpush2.msra.mxu0 0.0
    %470 = vmatprep.subr.mxu0 0.0
    %471 = vmatpush2.msra.mxu0 0.0
    %472 = vmatprep.subr.mxu0 0.0
    %473 = vmatpush2.msra.mxu0 0.0
    %474 = vmatprep.subr.mxu0 0.0
    %475 = vmatpush2.msra.mxu0 0.0
    %476 = vmatprep.subr.mxu0 0.0
    %477 = vmatpush2.msra.mxu0 0.0
    %478 = vmatprep.subr.mxu0 0.0
    %479 = vmatpush2.msra.mxu0 0.0
    %480 = vmatprep.mubr.f32.mxu0 0.0
    %481 = vmatmul.mubr.f32.gmra.mxu0 %v414
    %v482 = vpop.f32.mrf.mxu0
    %v483 = vadd.f32 0.0, %v482
    %v484 = vpop.f32.mrf.mxu0
    %485 = vdwg.mxu0
    %v486 = vld [vmem:[#allocation7] sm:$0xff]
    %487 = vrot.lane.b32.xlu0 %v149, 120
    %v488 = vpop.permute.xlu0 %487
    %489 = vrot.lane.b32.xlu0 %v149, 88
    %v490 = vpop.permute.xlu0 %489
    %v491 = vsel %vm160, %v488, 0
    %v493 = vsel %vm160, %v490, 0
    %495 = vmatprep.subr.mxu0 0.0
    %496 = vmatpush1.xpose.msra.mxu0 0.0
    %497 = vmatprep.subr.mxu0 0.0
    %498 = vmatpush1.xpose.msra.mxu0 0.0
    %499 = vmatprep.subr.mxu0 0.0
    %500 = vmatpush1.xpose.msra.mxu0 0.0
    %501 = vmatprep.subr.mxu0 0.0
    %502 = vmatpush1.xpose.msra.mxu0 0.0
    %503 = vmatprep.subr.mxu0 0.0
    %504 = vmatpush1.xpose.msra.mxu0 0.0
    %505 = vmatprep.subr.mxu0 0.0
    %506 = vmatpush1.xpose.msra.mxu0 0.0
    %507 = vmatprep.subr.mxu0 0.0
    %508 = vmatpush1.xpose.msra.mxu0 0.0
    %509 = vmatprep.subr.mxu0 0.0
    %510 = vmatpush1.xpose.msra.mxu0 0.0
    %511 = vmatprep.subr.mxu0 0.0
    %512 = vmatpush1.xpose.msra.mxu0 0.0
    %513 = vmatprep.subr.mxu0 0.0
    %514 = vmatpush1.xpose.msra.mxu0 0.0
    %515 = vmatprep.subr.mxu0 0.0
    %516 = vmatpush1.xpose.msra.mxu0 0.0
    %517 = vmatprep.subr.mxu0 0.0
    %518 = vmatpush1.xpose.msra.mxu0 0.0
    %519 = vmatprep.subr.mxu0 0.0
    %520 = vmatpush1.xpose.msra.mxu0 0.0
    %521 = vmatprep.subr.mxu0 0.0
    %522 = vmatpush1.xpose.msra.mxu0 0.0
    %523 = vmatprep.subr.mxu0 0.0
    %524 = vmatpush1.xpose.msra.mxu0 0.0
    %525 = vmatprep.subr.mxu0 0.0
    %526 = vmatpush1.xpose.msra.mxu0 %v493
    %527 = vmatprep.subr.mxu0 0.0
    %528 = vmatpush2.xpose.msra.mxu0 0.0
    %529 = vmatprep.subr.mxu0 0.0
    %530 = vmatpush2.xpose.msra.mxu0 0.0
    %531 = vmatprep.subr.mxu0 0.0
    %532 = vmatpush2.xpose.msra.mxu0 0.0
    %533 = vmatprep.subr.mxu0 0.0
    %534 = vmatpush2.xpose.msra.mxu0 0.0
    %535 = vmatprep.subr.mxu0 0.0
    %536 = vmatpush2.xpose.msra.mxu0 0.0
    %537 = vmatprep.subr.mxu0 0.0
    %538 = vmatpush2.xpose.msra.mxu0 0.0
    %539 = vmatprep.subr.mxu0 0.0
    %540 = vmatpush2.xpose.msra.mxu0 0.0
    %541 = vmatprep.subr.mxu0 0.0
    %542 = vmatpush2.xpose.msra.mxu0 0.0
    %543 = vmatprep.subr.mxu0 0.0
    %544 = vmatpush2.xpose.msra.mxu0 0.0
    %545 = vmatprep.subr.mxu0 0.0
    %546 = vmatpush2.xpose.msra.mxu0 0.0
    %547 = vmatprep.subr.mxu0 0.0
    %548 = vmatpush2.xpose.msra.mxu0 0.0
    %549 = vmatprep.subr.mxu0 0.0
    %550 = vmatpush2.xpose.msra.mxu0 0.0
    %551 = vmatprep.subr.mxu0 0.0
    %552 = vmatpush2.xpose.msra.mxu0 0.0
    %553 = vmatprep.subr.mxu0 0.0
    %554 = vmatpush2.xpose.msra.mxu0 0.0
    %555 = vmatprep.subr.mxu0 0.0
    %556 = vmatpush2.xpose.msra.mxu0 0.0
    %557 = vmatprep.subr.mxu0 0.0
    %558 = vmatpush2.xpose.msra.mxu0 0.0
    %559 = vmatprep.mubr.f32.mxu0 0.0
    %560 = vmatmul.mubr.f32.gmra.mxu0 %v491
    %v561 = vpop.f32.mrf.mxu0
    %v562 = vadd.f32 0.0, %v561
    %v563 = vpop.f32.mrf.mxu0
    %564 = vdwg.mxu0
    %565 = vrot.lane.b32.xlu0 %v154, 120
    %v566 = vpop.permute.xlu0 %565
    %567 = vrot.lane.b32.xlu0 %v154, 88
    %v568 = vpop.permute.xlu0 %567
    %v569 = vsel %vm160, %v566, 0
    %v571 = vsel %vm160, %v568, 0
    %573 = vmatprep.subr.mxu0 0.0
    %574 = vmatpush1.xpose.msra.mxu0 0.0
    %575 = vmatprep.subr.mxu0 0.0
    %576 = vmatpush1.xpose.msra.mxu0 0.0
    %577 = vmatprep.subr.mxu0 0.0
    %578 = vmatpush1.xpose.msra.mxu0 0.0
    %579 = vmatprep.subr.mxu0 0.0
    %580 = vmatpush1.xpose.msra.mxu0 0.0
    %581 = vmatprep.subr.mxu0 0.0
    %582 = vmatpush1.xpose.msra.mxu0 0.0
    %583 = vmatprep.subr.mxu0 0.0
    %584 = vmatpush1.xpose.msra.mxu0 0.0
    %585 = vmatprep.subr.mxu0 0.0
    %586 = vmatpush1.xpose.msra.mxu0 0.0
    %587 = vmatprep.subr.mxu0 0.0
    %588 = vmatpush1.xpose.msra.mxu0 0.0
    %589 = vmatprep.subr.mxu0 0.0
    %590 = vmatpush1.xpose.msra.mxu0 0.0
    %591 = vmatprep.subr.mxu0 0.0
    %592 = vmatpush1.xpose.msra.mxu0 0.0
    %593 = vmatprep.subr.mxu0 0.0
    %594 = vmatpush1.xpose.msra.mxu0 0.0
    %595 = vmatprep.subr.mxu0 0.0
    %596 = vmatpush1.xpose.msra.mxu0 0.0
    %597 = vmatprep.subr.mxu0 0.0
    %598 = vmatpush1.xpose.msra.mxu0 0.0
    %599 = vmatprep.subr.mxu0 0.0
    %600 = vmatpush1.xpose.msra.mxu0 0.0
    %601 = vmatprep.subr.mxu0 0.0
    %602 = vmatpush1.xpose.msra.mxu0 0.0
    %603 = vmatprep.subr.mxu0 0.0
    %604 = vmatpush1.xpose.msra.mxu0 %v571
    %605 = vmatprep.subr.mxu0 0.0
    %606 = vmatpush2.xpose.msra.mxu0 0.0
    %607 = vmatprep.subr.mxu0 0.0
    %608 = vmatpush2.xpose.msra.mxu0 0.0
    %609 = vmatprep.subr.mxu0 0.0
    %610 = vmatpush2.xpose.msra.mxu0 0.0
    %611 = vmatprep.subr.mxu0 0.0
    %612 = vmatpush2.xpose.msra.mxu0 0.0
    %613 = vmatprep.subr.mxu0 0.0
    %614 = vmatpush2.xpose.msra.mxu0 0.0
    %615 = vmatprep.subr.mxu0 0.0
    %616 = vmatpush2.xpose.msra.mxu0 0.0
    %617 = vmatprep.subr.mxu0 0.0
    %618 = vmatpush2.xpose.msra.mxu0 0.0
    %619 = vmatprep.subr.mxu0 0.0
    %620 = vmatpush2.xpose.msra.mxu0 0.0
    %621 = vmatprep.subr.mxu0 0.0
    %622 = vmatpush2.xpose.msra.mxu0 0.0
    %623 = vmatprep.subr.mxu0 0.0
    %624 = vmatpush2.xpose.msra.mxu0 0.0
    %625 = vmatprep.subr.mxu0 0.0
    %626 = vmatpush2.xpose.msra.mxu0 0.0
    %627 = vmatprep.subr.mxu0 0.0
    %628 = vmatpush2.xpose.msra.mxu0 0.0
    %629 = vmatprep.subr.mxu0 0.0
    %630 = vmatpush2.xpose.msra.mxu0 0.0
    %631 = vmatprep.subr.mxu0 0.0
    %632 = vmatpush2.xpose.msra.mxu0 0.0
    %633 = vmatprep.subr.mxu0 0.0
    %634 = vmatpush2.xpose.msra.mxu0 0.0
    %635 = vmatprep.subr.mxu0 0.0
    %636 = vmatpush2.xpose.msra.mxu0 0.0
    %637 = vmatprep.mubr.f32.mxu0 0.0
    %638 = vmatmul.mubr.f32.gmra.mxu0 %v569
    %v639 = vpop.f32.mrf.mxu0
    %v640 = vadd.f32 0.0, %v639
    %v641 = vpop.f32.mrf.mxu0
    %642 = vdwg.mxu0
    %v643 = vsel %vm160, %v562, -inf
    %644 = vmax.xlane.f32.xlu0 %v643
    %v645 = vpop.xlane.xlu0 %644
    %v646 = vsel %vm160, %v640, -inf
    %647 = vmax.xlane.f32.xlu0 %v646
    %v648 = vpop.xlane.xlu0 %647
    %v649 = vsub.f32 %v562, %v645
    %v650 = vsub.f32 %v640, %v648
    %v651 = vmul.f32 %v649, 1.442695
    %v652 = vpow.pop %v651
    %v653 = vmul.f32 %v650, 1.442695
    %v654 = vpow.pop %v653
    %v655 = vsel %vm160, %v652, 0.0
    %656 = vadd.xlane.f32.xlu0 %v655
    %v657 = vpop.xlane.xlu0 %656
    %v658 = vsel %vm160, %v654, 0.0
    %659 = vadd.xlane.f32.xlu0 %v658
    %v660 = vpop.xlane.xlu0 %659
    %v661 = vrcp.pop %v657
    %v662 = vmul.f32 %v652, %v661
    %v663 = vrcp.pop %v660
    %v664 = vmul.f32 %v654, %v663
    %665 = vrot.lane.b32.xlu0 %v149, 56
    %v666 = vpop.permute.xlu0 %665
    %v669 = vsel %vm160, %v662, 0
    %671 = vmatprep.subr.mxu0 0.0
    %672 = vmatpush1.msra.mxu0 0.0
    %673 = vmatprep.subr.mxu0 0.0
    %674 = vmatpush1.msra.mxu0 0.0
    %675 = vmatprep.subr.mxu0 0.0
    %676 = vmatpush1.msra.mxu0 0.0
    %677 = vmatprep.subr.mxu0 0.0
    %678 = vmatpush1.msra.mxu0 0.0
    %679 = vmatprep.subr.mxu0 0.0
    %680 = vmatpush1.msra.mxu0 0.0
    %681 = vmatprep.subr.mxu0 0.0
    %682 = vmatpush1.msra.mxu0 0.0
    %683 = vmatprep.subr.mxu0 0.0
    %684 = vmatpush1.msra.mxu0 0.0
    %685 = vmatprep.subr.mxu0 0.0
    %686 = vmatpush1.msra.mxu0 0.0
    %687 = vmatprep.subr.mxu0 0.0
    %688 = vmatpush1.msra.mxu0 0.0
    %689 = vmatprep.subr.mxu0 0.0
    %690 = vmatpush1.msra.mxu0 0.0
    %691 = vmatprep.subr.mxu0 0.0
    %692 = vmatpush1.msra.mxu0 0.0
    %693 = vmatprep.subr.mxu0 0.0
    %694 = vmatpush1.msra.mxu0 0.0
    %695 = vmatprep.subr.mxu0 0.0
    %696 = vmatpush1.msra.mxu0 0.0
    %697 = vmatprep.subr.mxu0 0.0
    %698 = vmatpush1.msra.mxu0 0.0
    %699 = vmatprep.subr.mxu0 0.0
    %700 = vmatpush1.msra.mxu0 0.0
    %701 = vmatprep.subr.mxu0 0.0
    %702 = vmatpush1.msra.mxu0 %v666
    %703 = vmatprep.subr.mxu0 0.0
    %704 = vmatpush2.msra.mxu0 0.0
    %705 = vmatprep.subr.mxu0 0.0
    %706 = vmatpush2.msra.mxu0 0.0
    %707 = vmatprep.subr.mxu0 0.0
    %708 = vmatpush2.msra.mxu0 0.0
    %709 = vmatprep.subr.mxu0 0.0
    %710 = vmatpush2.msra.mxu0 0.0
    %711 = vmatprep.subr.mxu0 0.0
    %712 = vmatpush2.msra.mxu0 0.0
    %713 = vmatprep.subr.mxu0 0.0
    %714 = vmatpush2.msra.mxu0 0.0
    %715 = vmatprep.subr.mxu0 0.0
    %716 = vmatpush2.msra.mxu0 0.0
    %717 = vmatprep.subr.mxu0 0.0
    %718 = vmatpush2.msra.mxu0 0.0
    %719 = vmatprep.subr.mxu0 0.0
    %720 = vmatpush2.msra.mxu0 0.0
    %721 = vmatprep.subr.mxu0 0.0
    %722 = vmatpush2.msra.mxu0 0.0
    %723 = vmatprep.subr.mxu0 0.0
    %724 = vmatpush2.msra.mxu0 0.0
    %725 = vmatprep.subr.mxu0 0.0
    %726 = vmatpush2.msra.mxu0 0.0
    %727 = vmatprep.subr.mxu0 0.0
    %728 = vmatpush2.msra.mxu0 0.0
    %729 = vmatprep.subr.mxu0 0.0
    %730 = vmatpush2.msra.mxu0 0.0
    %731 = vmatprep.subr.mxu0 0.0
    %732 = vmatpush2.msra.mxu0 0.0
    %733 = vmatprep.subr.mxu0 0.0
    %734 = vmatpush2.msra.mxu0 0.0
    %735 = vmatprep.mubr.f32.mxu0 0.0
    %736 = vmatmul.mubr.f32.gmra.mxu0 %v669
    %v737 = vpop.f32.mrf.mxu0
    %v738 = vadd.f32 0.0, %v737
    %v739 = vpop.f32.mrf.mxu0
    %740 = vdwg.mxu0
    %741 = vrot.lane.b32.xlu0 %v154, 56
    %v742 = vpop.permute.xlu0 %741
    %v745 = vsel %vm160, %v664, 0
    %747 = vmatprep.subr.mxu0 0.0
    %748 = vmatpush1.msra.mxu0 0.0
    %749 = vmatprep.subr.mxu0 0.0
    %750 = vmatpush1.msra.mxu0 0.0
    %751 = vmatprep.subr.mxu0 0.0
    %752 = vmatpush1.msra.mxu0 0.0
    %753 = vmatprep.subr.mxu0 0.0
    %754 = vmatpush1.msra.mxu0 0.0
    %755 = vmatprep.subr.mxu0 0.0
    %756 = vmatpush1.msra.mxu0 0.0
    %757 = vmatprep.subr.mxu0 0.0
    %758 = vmatpush1.msra.mxu0 0.0
    %759 = vmatprep.subr.mxu0 0.0
    %760 = vmatpush1.msra.mxu0 0.0
    %761 = vmatprep.subr.mxu0 0.0
    %762 = vmatpush1.msra.mxu0 0.0
    %763 = vmatprep.subr.mxu0 0.0
    %764 = vmatpush1.msra.mxu0 0.0
    %765 = vmatprep.subr.mxu0 0.0
    %766 = vmatpush1.msra.mxu0 0.0
    %767 = vmatprep.subr.mxu0 0.0
    %768 = vmatpush1.msra.mxu0 0.0
    %769 = vmatprep.subr.mxu0 0.0
    %770 = vmatpush1.msra.mxu0 0.0
    %771 = vmatprep.subr.mxu0 0.0
    %772 = vmatpush1.msra.mxu0 0.0
    %773 = vmatprep.subr.mxu0 0.0
    %774 = vmatpush1.msra.mxu0 0.0
    %775 = vmatprep.subr.mxu0 0.0
    %776 = vmatpush1.msra.mxu0 0.0
    %777 = vmatprep.subr.mxu0 0.0
    %778 = vmatpush1.msra.mxu0 %v742
    %779 = vmatprep.subr.mxu0 0.0
    %780 = vmatpush2.msra.mxu0 0.0
    %781 = vmatprep.subr.mxu0 0.0
    %782 = vmatpush2.msra.mxu0 0.0
    %783 = vmatprep.subr.mxu0 0.0
    %784 = vmatpush2.msra.mxu0 0.0
    %785 = vmatprep.subr.mxu0 0.0
    %786 = vmatpush2.msra.mxu0 0.0
    %787 = vmatprep.subr.mxu0 0.0
    %788 = vmatpush2.msra.mxu0 0.0
    %789 = vmatprep.subr.mxu0 0.0
    %790 = vmatpush2.msra.mxu0 0.0
    %791 = vmatprep.subr.mxu0 0.0
    %792 = vmatpush2.msra.mxu0 0.0
    %793 = vmatprep.subr.mxu0 0.0
    %794 = vmatpush2.msra.mxu0 0.0
    %795 = vmatprep.subr.mxu0 0.0
    %796 = vmatpush2.msra.mxu0 0.0
    %797 = vmatprep.subr.mxu0 0.0
    %798 = vmatpush2.msra.mxu0 0.0
    %799 = vmatprep.subr.mxu0 0.0
    %800 = vmatpush2.msra.mxu0 0.0
    %801 = vmatprep.subr.mxu0 0.0
    %802 = vmatpush2.msra.mxu0 0.0
    %803 = vmatprep.subr.mxu0 0.0
    %804 = vmatpush2.msra.mxu0 0.0
    %805 = vmatprep.subr.mxu0 0.0
    %806 = vmatpush2.msra.mxu0 0.0
    %807 = vmatprep.subr.mxu0 0.0
    %808 = vmatpush2.msra.mxu0 0.0
    %809 = vmatprep.subr.mxu0 0.0
    %810 = vmatpush2.msra.mxu0 0.0
    %811 = vmatprep.mubr.f32.mxu0 0.0
    %812 = vmatmul.mubr.f32.gmra.mxu0 %v745
    %v813 = vpop.f32.mrf.mxu0
    %v814 = vadd.f32 0.0, %v813
    %v815 = vpop.f32.mrf.mxu0
    %816 = vdwg.mxu0
    %v817 = vld [vmem:[#allocation7 + $0x8] sm:$0xff]
    %v819 = vsel %vm160, %v738, 0
    %v822 = vsel %vm160, %v814, 0
    %824 = vmatprep.subr.mxu0 0.0
    %825 = vmatpush1.msra.mxu0 0.0
    %826 = vmatprep.subr.mxu0 0.0
    %827 = vmatpush1.msra.mxu0 0.0
    %828 = vmatprep.subr.mxu0 0.0
    %829 = vmatpush1.msra.mxu0 0.0
    %830 = vmatprep.subr.mxu0 0.0
    %831 = vmatpush1.msra.mxu0 0.0
    %832 = vmatprep.subr.mxu0 0.0
    %833 = vmatpush1.msra.mxu0 0.0
    %834 = vmatprep.subr.mxu0 0.0
    %835 = vmatpush1.msra.mxu0 0.0
    %836 = vmatprep.subr.mxu0 0.0
    %837 = vmatpush1.msra.mxu0 0.0
    %838 = vmatprep.subr.mxu0 0.0
    %839 = vmatpush1.msra.mxu0 0.0
    %840 = vmatprep.subr.mxu0 0.0
    %841 = vmatpush1.msra.mxu0 0.0
    %842 = vmatprep.subr.mxu0 0.0
    %843 = vmatpush1.msra.mxu0 0.0
    %844 = vmatprep.subr.mxu0 0.0
    %845 = vmatpush1.msra.mxu0 0.0
    %846 = vmatprep.subr.mxu0 0.0
    %847 = vmatpush1.msra.mxu0 0.0
    %848 = vmatprep.subr.mxu0 0.0
    %849 = vmatpush1.msra.mxu0 0.0
    %850 = vmatprep.subr.mxu0 0.0
    %851 = vmatpush1.msra.mxu0 0.0
    %852 = vmatprep.subr.mxu0 0.0
    %853 = vmatpush1.msra.mxu0 0.0
    %854 = vmatprep.subr.mxu0 0.0
    %855 = vmatpush1.msra.mxu0 %v817
    %856 = vmatprep.subr.mxu0 0.0
    %857 = vmatpush2.msra.mxu0 0.0
    %858 = vmatprep.subr.mxu0 0.0
    %859 = vmatpush2.msra.mxu0 0.0
    %860 = vmatprep.subr.mxu0 0.0
    %861 = vmatpush2.msra.mxu0 0.0
    %862 = vmatprep.subr.mxu0 0.0
    %863 = vmatpush2.msra.mxu0 0.0
    %864 = vmatprep.subr.mxu0 0.0
    %865 = vmatpush2.msra.mxu0 0.0
    %866 = vmatprep.subr.mxu0 0.0
    %867 = vmatpush2.msra.mxu0 0.0
    %868 = vmatprep.subr.mxu0 0.0
    %869 = vmatpush2.msra.mxu0 0.0
    %870 = vmatprep.subr.mxu0 0.0
    %871 = vmatpush2.msra.mxu0 0.0
    %872 = vmatprep.subr.mxu0 0.0
    %873 = vmatpush2.msra.mxu0 0.0
    %874 = vmatprep.subr.mxu0 0.0
    %875 = vmatpush2.msra.mxu0 0.0
    %876 = vmatprep.subr.mxu0 0.0
    %877 = vmatpush2.msra.mxu0 0.0
    %878 = vmatprep.subr.mxu0 0.0
    %879 = vmatpush2.msra.mxu0 0.0
    %880 = vmatprep.subr.mxu0 0.0
    %881 = vmatpush2.msra.mxu0 0.0
    %882 = vmatprep.subr.mxu0 0.0
    %883 = vmatpush2.msra.mxu0 0.0
    %884 = vmatprep.subr.mxu0 0.0
    %885 = vmatpush2.msra.mxu0 0.0
    %886 = vmatprep.subr.mxu0 0.0
    %887 = vmatpush2.msra.mxu0 0.0
    %888 = vmatprep.mubr.f32.mxu0 0.0
    %889 = vmatmul.mubr.f32.gmra.mxu0 %v819
    %v890 = vpop.f32.mrf.mxu0
    %v891 = vadd.f32 0.0, %v890
    %v892 = vpop.f32.mrf.mxu0
    %893 = vmatprep.mubr.f32.mxu0 0.0
    %894 = vmatmul.mubr.f32.gmra.mxu0 %v822
    %v895 = vpop.f32.mrf.mxu0
    %v896 = vadd.f32 0.0, %v895
    %v897 = vpop.f32.mrf.mxu0
    %898 = vdwg.mxu0
    %v900 = vsel %vm160, %v407, 0
    %v903 = vsel %vm160, %v483, 0
    %905 = vmatprep.subr.mxu0 0.0
    %906 = vmatpush1.msra.mxu0 0.0
    %907 = vmatprep.subr.mxu0 0.0
    %908 = vmatpush1.msra.mxu0 0.0
    %909 = vmatprep.subr.mxu0 0.0
    %910 = vmatpush1.msra.mxu0 0.0
    %911 = vmatprep.subr.mxu0 0.0
    %912 = vmatpush1.msra.mxu0 0.0
    %913 = vmatprep.subr.mxu0 0.0
    %914 = vmatpush1.msra.mxu0 0.0
    %915 = vmatprep.subr.mxu0 0.0
    %916 = vmatpush1.msra.mxu0 0.0
    %917 = vmatprep.subr.mxu0 0.0
    %918 = vmatpush1.msra.mxu0 0.0
    %919 = vmatprep.subr.mxu0 0.0
    %920 = vmatpush1.msra.mxu0 0.0
    %921 = vmatprep.subr.mxu0 0.0
    %922 = vmatpush1.msra.mxu0 0.0
    %923 = vmatprep.subr.mxu0 0.0
    %924 = vmatpush1.msra.mxu0 0.0
    %925 = vmatprep.subr.mxu0 0.0
    %926 = vmatpush1.msra.mxu0 0.0
    %927 = vmatprep.subr.mxu0 0.0
    %928 = vmatpush1.msra.mxu0 0.0
    %929 = vmatprep.subr.mxu0 0.0
    %930 = vmatpush1.msra.mxu0 0.0
    %931 = vmatprep.subr.mxu0 0.0
    %932 = vmatpush1.msra.mxu0 0.0
    %933 = vmatprep.subr.mxu0 0.0
    %934 = vmatpush1.msra.mxu0 0.0
    %935 = vmatprep.subr.mxu0 0.0
    %936 = vmatpush1.msra.mxu0 %v486
    %937 = vmatprep.subr.mxu0 0.0
    %938 = vmatpush2.msra.mxu0 0.0
    %939 = vmatprep.subr.mxu0 0.0
    %940 = vmatpush2.msra.mxu0 0.0
    %941 = vmatprep.subr.mxu0 0.0
    %942 = vmatpush2.msra.mxu0 0.0
    %943 = vmatprep.subr.mxu0 0.0
    %944 = vmatpush2.msra.mxu0 0.0
    %945 = vmatprep.subr.mxu0 0.0
    %946 = vmatpush2.msra.mxu0 0.0
    %947 = vmatprep.subr.mxu0 0.0
    %948 = vmatpush2.msra.mxu0 0.0
    %949 = vmatprep.subr.mxu0 0.0
    %950 = vmatpush2.msra.mxu0 0.0
    %951 = vmatprep.subr.mxu0 0.0
    %952 = vmatpush2.msra.mxu0 0.0
    %953 = vmatprep.subr.mxu0 0.0
    %954 = vmatpush2.msra.mxu0 0.0
    %955 = vmatprep.subr.mxu0 0.0
    %956 = vmatpush2.msra.mxu0 0.0
    %957 = vmatprep.subr.mxu0 0.0
    %958 = vmatpush2.msra.mxu0 0.0
    %959 = vmatprep.subr.mxu0 0.0
    %960 = vmatpush2.msra.mxu0 0.0
    %961 = vmatprep.subr.mxu0 0.0
    %962 = vmatpush2.msra.mxu0 0.0
    %963 = vmatprep.subr.mxu0 0.0
    %964 = vmatpush2.msra.mxu0 0.0
    %965 = vmatprep.subr.mxu0 0.0
    %966 = vmatpush2.msra.mxu0 0.0
    %967 = vmatprep.subr.mxu0 0.0
    %968 = vmatpush2.msra.mxu0 0.0
    %969 = vmatprep.mubr.f32.mxu0 0.0
    %970 = vmatmul.mubr.f32.gmra.mxu0 %v900
    %v971 = vpop.f32.mrf.mxu0
    %v972 = vadd.f32 %v891, %v971
    %v973 = vpop.f32.mrf.mxu0
    %974 = vmatprep.mubr.f32.mxu0 0.0
    %975 = vmatmul.mubr.f32.gmra.mxu0 %v903
    %v976 = vpop.f32.mrf.mxu0
    %v977 = vadd.f32 %v896, %v976
    %v978 = vpop.f32.mrf.mxu0
    %979 = vdwg.mxu0
    %980 = vrot.lane.b32.xlu0 %v149, 112
    %v981 = vpop.permute.xlu0 %980
    %982 = vrot.lane.b32.xlu0 %v149, 80
    %v983 = vpop.permute.xlu0 %982
    %v984 = vsel %vm160, %v981, 0
    %v986 = vsel %vm160, %v983, 0
    %988 = vmatprep.subr.mxu0 0.0
    %989 = vmatpush1.xpose.msra.mxu0 0.0
    %990 = vmatprep.subr.mxu0 0.0
    %991 = vmatpush1.xpose.msra.mxu0 0.0
    %992 = vmatprep.subr.mxu0 0.0
    %993 = vmatpush1.xpose.msra.mxu0 0.0
    %994 = vmatprep.subr.mxu0 0.0
    %995 = vmatpush1.xpose.msra.mxu0 0.0
    %996 = vmatprep.subr.mxu0 0.0
    %997 = vmatpush1.xpose.msra.mxu0 0.0
    %998 = vmatprep.subr.mxu0 0.0
    %999 = vmatpush1.xpose.msra.mxu0 0.0
    %1000 = vmatprep.subr.mxu0 0.0
    %1001 = vmatpush1.xpose.msra.mxu0 0.0
    %1002 = vmatprep.subr.mxu0 0.0
    %1003 = vmatpush1.xpose.msra.mxu0 0.0
    %1004 = vmatprep.subr.mxu0 0.0
    %1005 = vmatpush1.xpose.msra.mxu0 0.0
    %1006 = vmatprep.subr.mxu0 0.0
    %1007 = vmatpush1.xpose.msra.mxu0 0.0
    %1008 = vmatprep.subr.mxu0 0.0
    %1009 = vmatpush1.xpose.msra.mxu0 0.0
    %1010 = vmatprep.subr.mxu0 0.0
    %1011 = vmatpush1.xpose.msra.mxu0 0.0
    %1012 = vmatprep.subr.mxu0 0.0
    %1013 = vmatpush1.xpose.msra.mxu0 0.0
    %1014 = vmatprep.subr.mxu0 0.0
    %1015 = vmatpush1.xpose.msra.mxu0 0.0
    %1016 = vmatprep.subr.mxu0 0.0
    %1017 = vmatpush1.xpose.msra.mxu0 0.0
    %1018 = vmatprep.subr.mxu0 0.0
    %1019 = vmatpush1.xpose.msra.mxu0 %v986
    %1020 = vmatprep.subr.mxu0 0.0
    %1021 = vmatpush2.xpose.msra.mxu0 0.0
    %1022 = vmatprep.subr.mxu0 0.0
    %1023 = vmatpush2.xpose.msra.mxu0 0.0
    %1024 = vmatprep.subr.mxu0 0.0
    %1025 = vmatpush2.xpose.msra.mxu0 0.0
    %1026 = vmatprep.subr.mxu0 0.0
    %1027 = vmatpush2.xpose.msra.mxu0 0.0
    %1028 = vmatprep.subr.mxu0 0.0
    %1029 = vmatpush2.xpose.msra.mxu0 0.0
    %1030 = vmatprep.subr.mxu0 0.0
    %1031 = vmatpush2.xpose.msra.mxu0 0.0
    %1032 = vmatprep.subr.mxu0 0.0
    %1033 = vmatpush2.xpose.msra.mxu0 0.0
    %1034 = vmatprep.subr.mxu0 0.0
    %1035 = vmatpush2.xpose.msra.mxu0 0.0
    %1036 = vmatprep.subr.mxu0 0.0
    %1037 = vmatpush2.xpose.msra.mxu0 0.0
    %1038 = vmatprep.subr.mxu0 0.0
    %1039 = vmatpush2.xpose.msra.mxu0 0.0
    %1040 = vmatprep.subr.mxu0 0.0
    %1041 = vmatpush2.xpose.msra.mxu0 0.0
    %1042 = vmatprep.subr.mxu0 0.0
    %1043 = vmatpush2.xpose.msra.mxu0 0.0
    %1044 = vmatprep.subr.mxu0 0.0
    %1045 = vmatpush2.xpose.msra.mxu0 0.0
    %1046 = vmatprep.subr.mxu0 0.0
    %1047 = vmatpush2.xpose.msra.mxu0 0.0
    %1048 = vmatprep.subr.mxu0 0.0
    %1049 = vmatpush2.xpose.msra.mxu0 0.0
    %1050 = vmatprep.subr.mxu0 0.0
    %1051 = vmatpush2.xpose.msra.mxu0 0.0
    %1052 = vmatprep.mubr.f32.mxu0 0.0
    %1053 = vmatmul.mubr.f32.gmra.mxu0 %v984
    %v1054 = vpop.f32.mrf.mxu0
    %v1055 = vadd.f32 0.0, %v1054
    %v1056 = vpop.f32.mrf.mxu0
    %1057 = vdwg.mxu0
    %1058 = vrot.lane.b32.xlu0 %v154, 112
    %v1059 = vpop.permute.xlu0 %1058
    %1060 = vrot.lane.b32.xlu0 %v154, 80
    %v1061 = vpop.permute.xlu0 %1060
    %v1062 = vsel %vm160, %v1059, 0
    %v1064 = vsel %vm160, %v1061, 0
    %1066 = vmatprep.subr.mxu0 0.0
    %1067 = vmatpush1.xpose.msra.mxu0 0.0
    %1068 = vmatprep.subr.mxu0 0.0
    %1069 = vmatpush1.xpose.msra.mxu0 0.0
    %1070 = vmatprep.subr.mxu0 0.0
    %1071 = vmatpush1.xpose.msra.mxu0 0.0
    %1072 = vmatprep.subr.mxu0 0.0
    %1073 = vmatpush1.xpose.msra.mxu0 0.0
    %1074 = vmatprep.subr.mxu0 0.0
    %1075 = vmatpush1.xpose.msra.mxu0 0.0
    %1076 = vmatprep.subr.mxu0 0.0
    %1077 = vmatpush1.xpose.msra.mxu0 0.0
    %1078 = vmatprep.subr.mxu0 0.0
    %1079 = vmatpush1.xpose.msra.mxu0 0.0
    %1080 = vmatprep.subr.mxu0 0.0
    %1081 = vmatpush1.xpose.msra.mxu0 0.0
    %1082 = vmatprep.subr.mxu0 0.0
    %1083 = vmatpush1.xpose.msra.mxu0 0.0
    %1084 = vmatprep.subr.mxu0 0.0
    %1085 = vmatpush1.xpose.msra.mxu0 0.0
    %1086 = vmatprep.subr.mxu0 0.0
    %1087 = vmatpush1.xpose.msra.mxu0 0.0
    %1088 = vmatprep.subr.mxu0 0.0
    %1089 = vmatpush1.xpose.msra.mxu0 0.0
    %1090 = vmatprep.subr.mxu0 0.0
    %1091 = vmatpush1.xpose.msra.mxu0 0.0
    %1092 = vmatprep.subr.mxu0 0.0
    %1093 = vmatpush1.xpose.msra.mxu0 0.0
    %1094 = vmatprep.subr.mxu0 0.0
    %1095 = vmatpush1.xpose.msra.mxu0 0.0
    %1096 = vmatprep.subr.mxu0 0.0
    %1097 = vmatpush1.xpose.msra.mxu0 %v1064
    %1098 = vmatprep.subr.mxu0 0.0
    %1099 = vmatpush2.xpose.msra.mxu0 0.0
    %1100 = vmatprep.subr.mxu0 0.0
    %1101 = vmatpush2.xpose.msra.mxu0 0.0
    %1102 = vmatprep.subr.mxu0 0.0
    %1103 = vmatpush2.xpose.msra.mxu0 0.0
    %1104 = vmatprep.subr.mxu0 0.0
    %1105 = vmatpush2.xpose.msra.mxu0 0.0
    %1106 = vmatprep.subr.mxu0 0.0
    %1107 = vmatpush2.xpose.msra.mxu0 0.0
    %1108 = vmatprep.subr.mxu0 0.0
    %1109 = vmatpush2.xpose.msra.mxu0 0.0
    %1110 = vmatprep.subr.mxu0 0.0
    %1111 = vmatpush2.xpose.msra.mxu0 0.0
    %1112 = vmatprep.subr.mxu0 0.0
    %1113 = vmatpush2.xpose.msra.mxu0 0.0
    %1114 = vmatprep.subr.mxu0 0.0
    %1115 = vmatpush2.xpose.msra.mxu0 0.0
    %1116 = vmatprep.subr.mxu0 0.0
    %1117 = vmatpush2.xpose.msra.mxu0 0.0
    %1118 = vmatprep.subr.mxu0 0.0
    %1119 = vmatpush2.xpose.msra.mxu0 0.0
    %1120 = vmatprep.subr.mxu0 0.0
    %1121 = vmatpush2.xpose.msra.mxu0 0.0
    %1122 = vmatprep.subr.mxu0 0.0
    %1123 = vmatpush2.xpose.msra.mxu0 0.0
    %1124 = vmatprep.subr.mxu0 0.0
    %1125 = vmatpush2.xpose.msra.mxu0 0.0
    %1126 = vmatprep.subr.mxu0 0.0
    %1127 = vmatpush2.xpose.msra.mxu0 0.0
    %1128 = vmatprep.subr.mxu0 0.0
    %1129 = vmatpush2.xpose.msra.mxu0 0.0
    %1130 = vmatprep.mubr.f32.mxu0 0.0
    %1131 = vmatmul.mubr.f32.gmra.mxu0 %v1062
    %v1132 = vpop.f32.mrf.mxu0
    %v1133 = vadd.f32 0.0, %v1132
    %v1134 = vpop.f32.mrf.mxu0
    %1135 = vdwg.mxu0
    %v1136 = vsel %vm160, %v1055, -inf
    %1137 = vmax.xlane.f32.xlu0 %v1136
    %v1138 = vpop.xlane.xlu0 %1137
    %v1139 = vsel %vm160, %v1133, -inf
    %1140 = vmax.xlane.f32.xlu0 %v1139
    %v1141 = vpop.xlane.xlu0 %1140
    %v1142 = vsub.f32 %v1055, %v1138
    %v1143 = vsub.f32 %v1133, %v1141
    %v1144 = vmul.f32 %v1142, 1.442695
    %v1145 = vpow.pop %v1144
    %v1146 = vmul.f32 %v1143, 1.442695
    %v1147 = vpow.pop %v1146
    %v1148 = vsel %vm160, %v1145, 0.0
    %1149 = vadd.xlane.f32.xlu0 %v1148
    %v1150 = vpop.xlane.xlu0 %1149
    %v1151 = vsel %vm160, %v1147, 0.0
    %1152 = vadd.xlane.f32.xlu0 %v1151
    %v1153 = vpop.xlane.xlu0 %1152
    %v1154 = vrcp.pop %v1150
    %v1155 = vmul.f32 %v1145, %v1154
    %v1156 = vrcp.pop %v1153
    %v1157 = vmul.f32 %v1147, %v1156
    %1158 = vrot.lane.b32.xlu0 %v149, 48
    %v1159 = vpop.permute.xlu0 %1158
    %v1162 = vsel %vm160, %v1155, 0
    %1164 = vmatprep.subr.mxu0 0.0
    %1165 = vmatpush1.msra.mxu0 0.0
    %1166 = vmatprep.subr.mxu0 0.0
    %1167 = vmatpush1.msra.mxu0 0.0
    %1168 = vmatprep.subr.mxu0 0.0
    %1169 = vmatpush1.msra.mxu0 0.0
    %1170 = vmatprep.subr.mxu0 0.0
    %1171 = vmatpush1.msra.mxu0 0.0
    %1172 = vmatprep.subr.mxu0 0.0
    %1173 = vmatpush1.msra.mxu0 0.0
    %1174 = vmatprep.subr.mxu0 0.0
    %1175 = vmatpush1.msra.mxu0 0.0
    %1176 = vmatprep.subr.mxu0 0.0
    %1177 = vmatpush1.msra.mxu0 0.0
    %1178 = vmatprep.subr.mxu0 0.0
    %1179 = vmatpush1.msra.mxu0 0.0
    %1180 = vmatprep.subr.mxu0 0.0
    %1181 = vmatpush1.msra.mxu0 0.0
    %1182 = vmatprep.subr.mxu0 0.0
    %1183 = vmatpush1.msra.mxu0 0.0
    %1184 = vmatprep.subr.mxu0 0.0
    %1185 = vmatpush1.msra.mxu0 0.0
    %1186 = vmatprep.subr.mxu0 0.0
    %1187 = vmatpush1.msra.mxu0 0.0
    %1188 = vmatprep.subr.mxu0 0.0
    %1189 = vmatpush1.msra.mxu0 0.0
    %1190 = vmatprep.subr.mxu0 0.0
    %1191 = vmatpush1.msra.mxu0 0.0
    %1192 = vmatprep.subr.mxu0 0.0
    %1193 = vmatpush1.msra.mxu0 0.0
    %1194 = vmatprep.subr.mxu0 0.0
    %1195 = vmatpush1.msra.mxu0 %v1159
    %1196 = vmatprep.subr.mxu0 0.0
    %1197 = vmatpush2.msra.mxu0 0.0
    %1198 = vmatprep.subr.mxu0 0.0
    %1199 = vmatpush2.msra.mxu0 0.0
    %1200 = vmatprep.subr.mxu0 0.0
    %1201 = vmatpush2.msra.mxu0 0.0
    %1202 = vmatprep.subr.mxu0 0.0
    %1203 = vmatpush2.msra.mxu0 0.0
    %1204 = vmatprep.subr.mxu0 0.0
    %1205 = vmatpush2.msra.mxu0 0.0
    %1206 = vmatprep.subr.mxu0 0.0
    %1207 = vmatpush2.msra.mxu0 0.0
    %1208 = vmatprep.subr.mxu0 0.0
    %1209 = vmatpush2.msra.mxu0 0.0
    %1210 = vmatprep.subr.mxu0 0.0
    %1211 = vmatpush2.msra.mxu0 0.0
    %1212 = vmatprep.subr.mxu0 0.0
    %1213 = vmatpush2.msra.mxu0 0.0
    %1214 = vmatprep.subr.mxu0 0.0
    %1215 = vmatpush2.msra.mxu0 0.0
    %1216 = vmatprep.subr.mxu0 0.0
    %1217 = vmatpush2.msra.mxu0 0.0
    %1218 = vmatprep.subr.mxu0 0.0
    %1219 = vmatpush2.msra.mxu0 0.0
    %1220 = vmatprep.subr.mxu0 0.0
    %1221 = vmatpush2.msra.mxu0 0.0
    %1222 = vmatprep.subr.mxu0 0.0
    %1223 = vmatpush2.msra.mxu0 0.0
    %1224 = vmatprep.subr.mxu0 0.0
    %1225 = vmatpush2.msra.mxu0 0.0
    %1226 = vmatprep.subr.mxu0 0.0
    %1227 = vmatpush2.msra.mxu0 0.0
    %1228 = vmatprep.mubr.f32.mxu0 0.0
    %1229 = vmatmul.mubr.f32.gmra.mxu0 %v1162
    %v1230 = vpop.f32.mrf.mxu0
    %v1231 = vadd.f32 0.0, %v1230
    %v1232 = vpop.f32.mrf.mxu0
    %1233 = vdwg.mxu0
    %1234 = vrot.lane.b32.xlu0 %v154, 48
    %v1235 = vpop.permute.xlu0 %1234
    %v1238 = vsel %vm160, %v1157, 0
    %1240 = vmatprep.subr.mxu0 0.0
    %1241 = vmatpush1.msra.mxu0 0.0
    %1242 = vmatprep.subr.mxu0 0.0
    %1243 = vmatpush1.msra.mxu0 0.0
    %1244 = vmatprep.subr.mxu0 0.0
    %1245 = vmatpush1.msra.mxu0 0.0
    %1246 = vmatprep.subr.mxu0 0.0
    %1247 = vmatpush1.msra.mxu0 0.0
    %1248 = vmatprep.subr.mxu0 0.0
    %1249 = vmatpush1.msra.mxu0 0.0
    %1250 = vmatprep.subr.mxu0 0.0
    %1251 = vmatpush1.msra.mxu0 0.0
    %1252 = vmatprep.subr.mxu0 0.0
    %1253 = vmatpush1.msra.mxu0 0.0
    %1254 = vmatprep.subr.mxu0 0.0
    %1255 = vmatpush1.msra.mxu0 0.0
    %1256 = vmatprep.subr.mxu0 0.0
    %1257 = vmatpush1.msra.mxu0 0.0
    %1258 = vmatprep.subr.mxu0 0.0
    %1259 = vmatpush1.msra.mxu0 0.0
    %1260 = vmatprep.subr.mxu0 0.0
    %1261 = vmatpush1.msra.mxu0 0.0
    %1262 = vmatprep.subr.mxu0 0.0
    %1263 = vmatpush1.msra.mxu0 0.0
    %1264 = vmatprep.subr.mxu0 0.0
    %1265 = vmatpush1.msra.mxu0 0.0
    %1266 = vmatprep.subr.mxu0 0.0
    %1267 = vmatpush1.msra.mxu0 0.0
    %1268 = vmatprep.subr.mxu0 0.0
    %1269 = vmatpush1.msra.mxu0 0.0
    %1270 = vmatprep.subr.mxu0 0.0
    %1271 = vmatpush1.msra.mxu0 %v1235
    %1272 = vmatprep.subr.mxu0 0.0
    %1273 = vmatpush2.msra.mxu0 0.0
    %1274 = vmatprep.subr.mxu0 0.0
    %1275 = vmatpush2.msra.mxu0 0.0
    %1276 = vmatprep.subr.mxu0 0.0
    %1277 = vmatpush2.msra.mxu0 0.0
    %1278 = vmatprep.subr.mxu0 0.0
    %1279 = vmatpush2.msra.mxu0 0.0
    %1280 = vmatprep.subr.mxu0 0.0
    %1281 = vmatpush2.msra.mxu0 0.0
    %1282 = vmatprep.subr.mxu0 0.0
    %1283 = vmatpush2.msra.mxu0 0.0
    %1284 = vmatprep.subr.mxu0 0.0
    %1285 = vmatpush2.msra.mxu0 0.0
    %1286 = vmatprep.subr.mxu0 0.0
    %1287 = vmatpush2.msra.mxu0 0.0
    %1288 = vmatprep.subr.mxu0 0.0
    %1289 = vmatpush2.msra.mxu0 0.0
    %1290 = vmatprep.subr.mxu0 0.0
    %1291 = vmatpush2.msra.mxu0 0.0
    %1292 = vmatprep.subr.mxu0 0.0
    %1293 = vmatpush2.msra.mxu0 0.0
    %1294 = vmatprep.subr.mxu0 0.0
    %1295 = vmatpush2.msra.mxu0 0.0
    %1296 = vmatprep.subr.mxu0 0.0
    %1297 = vmatpush2.msra.mxu0 0.0
    %1298 = vmatprep.subr.mxu0 0.0
    %1299 = vmatpush2.msra.mxu0 0.0
    %1300 = vmatprep.subr.mxu0 0.0
    %1301 = vmatpush2.msra.mxu0 0.0
    %1302 = vmatprep.subr.mxu0 0.0
    %1303 = vmatpush2.msra.mxu0 0.0
    %1304 = vmatprep.mubr.f32.mxu0 0.0
    %1305 = vmatmul.mubr.f32.gmra.mxu0 %v1238
    %v1306 = vpop.f32.mrf.mxu0
    %v1307 = vadd.f32 0.0, %v1306
    %v1308 = vpop.f32.mrf.mxu0
    %1309 = vdwg.mxu0
    %v1310 = vld [vmem:[#allocation7 + $0x10] sm:$0xff]
    %v1312 = vsel %vm160, %v1231, 0
    %v1315 = vsel %vm160, %v1307, 0
    %1317 = vmatprep.subr.mxu0 0.0
    %1318 = vmatpush1.msra.mxu0 0.0
    %1319 = vmatprep.subr.mxu0 0.0
    %1320 = vmatpush1.msra.mxu0 0.0
    %1321 = vmatprep.subr.mxu0 0.0
    %1322 = vmatpush1.msra.mxu0 0.0
    %1323 = vmatprep.subr.mxu0 0.0
    %1324 = vmatpush1.msra.mxu0 0.0
    %1325 = vmatprep.subr.mxu0 0.0
    %1326 = vmatpush1.msra.mxu0 0.0
    %1327 = vmatprep.subr.mxu0 0.0
    %1328 = vmatpush1.msra.mxu0 0.0
    %1329 = vmatprep.subr.mxu0 0.0
    %1330 = vmatpush1.msra.mxu0 0.0
    %1331 = vmatprep.subr.mxu0 0.0
    %1332 = vmatpush1.msra.mxu0 0.0
    %1333 = vmatprep.subr.mxu0 0.0
    %1334 = vmatpush1.msra.mxu0 0.0
    %1335 = vmatprep.subr.mxu0 0.0
    %1336 = vmatpush1.msra.mxu0 0.0
    %1337 = vmatprep.subr.mxu0 0.0
    %1338 = vmatpush1.msra.mxu0 0.0
    %1339 = vmatprep.subr.mxu0 0.0
    %1340 = vmatpush1.msra.mxu0 0.0
    %1341 = vmatprep.subr.mxu0 0.0
    %1342 = vmatpush1.msra.mxu0 0.0
    %1343 = vmatprep.subr.mxu0 0.0
    %1344 = vmatpush1.msra.mxu0 0.0
    %1345 = vmatprep.subr.mxu0 0.0
    %1346 = vmatpush1.msra.mxu0 0.0
    %1347 = vmatprep.subr.mxu0 0.0
    %1348 = vmatpush1.msra.mxu0 %v1310
    %1349 = vmatprep.subr.mxu0 0.0
    %1350 = vmatpush2.msra.mxu0 0.0
    %1351 = vmatprep.subr.mxu0 0.0
    %1352 = vmatpush2.msra.mxu0 0.0
    %1353 = vmatprep.subr.mxu0 0.0
    %1354 = vmatpush2.msra.mxu0 0.0
    %1355 = vmatprep.subr.mxu0 0.0
    %1356 = vmatpush2.msra.mxu0 0.0
    %1357 = vmatprep.subr.mxu0 0.0
    %1358 = vmatpush2.msra.mxu0 0.0
    %1359 = vmatprep.subr.mxu0 0.0
    %1360 = vmatpush2.msra.mxu0 0.0
    %1361 = vmatprep.subr.mxu0 0.0
    %1362 = vmatpush2.msra.mxu0 0.0
    %1363 = vmatprep.subr.mxu0 0.0
    %1364 = vmatpush2.msra.mxu0 0.0
    %1365 = vmatprep.subr.mxu0 0.0
    %1366 = vmatpush2.msra.mxu0 0.0
    %1367 = vmatprep.subr.mxu0 0.0
    %1368 = vmatpush2.msra.mxu0 0.0
    %1369 = vmatprep.subr.mxu0 0.0
    %1370 = vmatpush2.msra.mxu0 0.0
    %1371 = vmatprep.subr.mxu0 0.0
    %1372 = vmatpush2.msra.mxu0 0.0
    %1373 = vmatprep.subr.mxu0 0.0
    %1374 = vmatpush2.msra.mxu0 0.0
    %1375 = vmatprep.subr.mxu0 0.0
    %1376 = vmatpush2.msra.mxu0 0.0
    %1377 = vmatprep.subr.mxu0 0.0
    %1378 = vmatpush2.msra.mxu0 0.0
    %1379 = vmatprep.subr.mxu0 0.0
    %1380 = vmatpush2.msra.mxu0 0.0
    %1381 = vmatprep.mubr.f32.mxu0 0.0
    %1382 = vmatmul.mubr.f32.gmra.mxu0 %v1312
    %v1383 = vpop.f32.mrf.mxu0
    %v1384 = vadd.f32 0.0, %v1383
    %v1385 = vpop.f32.mrf.mxu0
    %1386 = vmatprep.mubr.f32.mxu0 0.0
    %1387 = vmatmul.mubr.f32.gmra.mxu0 %v1315
    %v1388 = vpop.f32.mrf.mxu0
    %v1389 = vadd.f32 0.0, %v1388
    %v1390 = vpop.f32.mrf.mxu0
    %1391 = vdwg.mxu0
    %v1392 = vadd.f32 %v972, %v1384
    %v1393 = vadd.f32 %v977, %v1389
    %1394 = vrot.lane.b32.xlu0 %v149, 104
    %v1395 = vpop.permute.xlu0 %1394
    %1396 = vrot.lane.b32.xlu0 %v149, 72
    %v1397 = vpop.permute.xlu0 %1396
    %v1398 = vsel %vm160, %v1395, 0
    %v1400 = vsel %vm160, %v1397, 0
    %1402 = vmatprep.subr.mxu0 0.0
    %1403 = vmatpush1.xpose.msra.mxu0 0.0
    %1404 = vmatprep.subr.mxu0 0.0
    %1405 = vmatpush1.xpose.msra.mxu0 0.0
    %1406 = vmatprep.subr.mxu0 0.0
    %1407 = vmatpush1.xpose.msra.mxu0 0.0
    %1408 = vmatprep.subr.mxu0 0.0
    %1409 = vmatpush1.xpose.msra.mxu0 0.0
    %1410 = vmatprep.subr.mxu0 0.0
    %1411 = vmatpush1.xpose.msra.mxu0 0.0
    %1412 = vmatprep.subr.mxu0 0.0
    %1413 = vmatpush1.xpose.msra.mxu0 0.0
    %1414 = vmatprep.subr.mxu0 0.0
    %1415 = vmatpush1.xpose.msra.mxu0 0.0
    %1416 = vmatprep.subr.mxu0 0.0
    %1417 = vmatpush1.xpose.msra.mxu0 0.0
    %1418 = vmatprep.subr.mxu0 0.0
    %1419 = vmatpush1.xpose.msra.mxu0 0.0
    %1420 = vmatprep.subr.mxu0 0.0
    %1421 = vmatpush1.xpose.msra.mxu0 0.0
    %1422 = vmatprep.subr.mxu0 0.0
    %1423 = vmatpush1.xpose.msra.mxu0 0.0
    %1424 = vmatprep.subr.mxu0 0.0
    %1425 = vmatpush1.xpose.msra.mxu0 0.0
    %1426 = vmatprep.subr.mxu0 0.0
    %1427 = vmatpush1.xpose.msra.mxu0 0.0
    %1428 = vmatprep.subr.mxu0 0.0
    %1429 = vmatpush1.xpose.msra.mxu0 0.0
    %1430 = vmatprep.subr.mxu0 0.0
    %1431 = vmatpush1.xpose.msra.mxu0 0.0
    %1432 = vmatprep.subr.mxu0 0.0
    %1433 = vmatpush1.xpose.msra.mxu0 %v1400
    %1434 = vmatprep.subr.mxu0 0.0
    %1435 = vmatpush2.xpose.msra.mxu0 0.0
    %1436 = vmatprep.subr.mxu0 0.0
    %1437 = vmatpush2.xpose.msra.mxu0 0.0
    %1438 = vmatprep.subr.mxu0 0.0
    %1439 = vmatpush2.xpose.msra.mxu0 0.0
    %1440 = vmatprep.subr.mxu0 0.0
    %1441 = vmatpush2.xpose.msra.mxu0 0.0
    %1442 = vmatprep.subr.mxu0 0.0
    %1443 = vmatpush2.xpose.msra.mxu0 0.0
    %1444 = vmatprep.subr.mxu0 0.0
    %1445 = vmatpush2.xpose.msra.mxu0 0.0
    %1446 = vmatprep.subr.mxu0 0.0
    %1447 = vmatpush2.xpose.msra.mxu0 0.0
    %1448 = vmatprep.subr.mxu0 0.0
    %1449 = vmatpush2.xpose.msra.mxu0 0.0
    %1450 = vmatprep.subr.mxu0 0.0
    %1451 = vmatpush2.xpose.msra.mxu0 0.0
    %1452 = vmatprep.subr.mxu0 0.0
    %1453 = vmatpush2.xpose.msra.mxu0 0.0
    %1454 = vmatprep.subr.mxu0 0.0
    %1455 = vmatpush2.xpose.msra.mxu0 0.0
    %1456 = vmatprep.subr.mxu0 0.0
    %1457 = vmatpush2.xpose.msra.mxu0 0.0
    %1458 = vmatprep.subr.mxu0 0.0
    %1459 = vmatpush2.xpose.msra.mxu0 0.0
    %1460 = vmatprep.subr.mxu0 0.0
    %1461 = vmatpush2.xpose.msra.mxu0 0.0
    %1462 = vmatprep.subr.mxu0 0.0
    %1463 = vmatpush2.xpose.msra.mxu0 0.0
    %1464 = vmatprep.subr.mxu0 0.0
    %1465 = vmatpush2.xpose.msra.mxu0 0.0
    %1466 = vmatprep.mubr.f32.mxu0 0.0
    %1467 = vmatmul.mubr.f32.gmra.mxu0 %v1398
    %v1468 = vpop.f32.mrf.mxu0
    %v1469 = vadd.f32 0.0, %v1468
    %v1470 = vpop.f32.mrf.mxu0
    %1471 = vdwg.mxu0
    %1472 = vrot.lane.b32.xlu0 %v154, 104
    %v1473 = vpop.permute.xlu0 %1472
    %1474 = vrot.lane.b32.xlu0 %v154, 72
    %v1475 = vpop.permute.xlu0 %1474
    %v1476 = vsel %vm160, %v1473, 0
    %v1478 = vsel %vm160, %v1475, 0
    %1480 = vmatprep.subr.mxu0 0.0
    %1481 = vmatpush1.xpose.msra.mxu0 0.0
    %1482 = vmatprep.subr.mxu0 0.0
    %1483 = vmatpush1.xpose.msra.mxu0 0.0
    %1484 = vmatprep.subr.mxu0 0.0
    %1485 = vmatpush1.xpose.msra.mxu0 0.0
    %1486 = vmatprep.subr.mxu0 0.0
    %1487 = vmatpush1.xpose.msra.mxu0 0.0
    %1488 = vmatprep.subr.mxu0 0.0
    %1489 = vmatpush1.xpose.msra.mxu0 0.0
    %1490 = vmatprep.subr.mxu0 0.0
    %1491 = vmatpush1.xpose.msra.mxu0 0.0
    %1492 = vmatprep.subr.mxu0 0.0
    %1493 = vmatpush1.xpose.msra.mxu0 0.0
    %1494 = vmatprep.subr.mxu0 0.0
    %1495 = vmatpush1.xpose.msra.mxu0 0.0
    %1496 = vmatprep.subr.mxu0 0.0
    %1497 = vmatpush1.xpose.msra.mxu0 0.0
    %1498 = vmatprep.subr.mxu0 0.0
    %1499 = vmatpush1.xpose.msra.mxu0 0.0
    %1500 = vmatprep.subr.mxu0 0.0
    %1501 = vmatpush1.xpose.msra.mxu0 0.0
    %1502 = vmatprep.subr.mxu0 0.0
    %1503 = vmatpush1.xpose.msra.mxu0 0.0
    %1504 = vmatprep.subr.mxu0 0.0
    %1505 = vmatpush1.xpose.msra.mxu0 0.0
    %1506 = vmatprep.subr.mxu0 0.0
    %1507 = vmatpush1.xpose.msra.mxu0 0.0
    %1508 = vmatprep.subr.mxu0 0.0
    %1509 = vmatpush1.xpose.msra.mxu0 0.0
    %1510 = vmatprep.subr.mxu0 0.0
    %1511 = vmatpush1.xpose.msra.mxu0 %v1478
    %1512 = vmatprep.subr.mxu0 0.0
    %1513 = vmatpush2.xpose.msra.mxu0 0.0
    %1514 = vmatprep.subr.mxu0 0.0
    %1515 = vmatpush2.xpose.msra.mxu0 0.0
    %1516 = vmatprep.subr.mxu0 0.0
    %1517 = vmatpush2.xpose.msra.mxu0 0.0
    %1518 = vmatprep.subr.mxu0 0.0
    %1519 = vmatpush2.xpose.msra.mxu0 0.0
    %1520 = vmatprep.subr.mxu0 0.0
    %1521 = vmatpush2.xpose.msra.mxu0 0.0
    %1522 = vmatprep.subr.mxu0 0.0
    %1523 = vmatpush2.xpose.msra.mxu0 0.0
    %1524 = vmatprep.subr.mxu0 0.0
    %1525 = vmatpush2.xpose.msra.mxu0 0.0
    %1526 = vmatprep.subr.mxu0 0.0
    %1527 = vmatpush2.xpose.msra.mxu0 0.0
    %1528 = vmatprep.subr.mxu0 0.0
    %1529 = vmatpush2.xpose.msra.mxu0 0.0
    %1530 = vmatprep.subr.mxu0 0.0
    %1531 = vmatpush2.xpose.msra.mxu0 0.0
    %1532 = vmatprep.subr.mxu0 0.0
    %1533 = vmatpush2.xpose.msra.mxu0 0.0
    %1534 = vmatprep.subr.mxu0 0.0
    %1535 = vmatpush2.xpose.msra.mxu0 0.0
    %1536 = vmatprep.subr.mxu0 0.0
    %1537 = vmatpush2.xpose.msra.mxu0 0.0
    %1538 = vmatprep.subr.mxu0 0.0
    %1539 = vmatpush2.xpose.msra.mxu0 0.0
    %1540 = vmatprep.subr.mxu0 0.0
    %1541 = vmatpush2.xpose.msra.mxu0 0.0
    %1542 = vmatprep.subr.mxu0 0.0
    %1543 = vmatpush2.xpose.msra.mxu0 0.0
    %1544 = vmatprep.mubr.f32.mxu0 0.0
    %1545 = vmatmul.mubr.f32.gmra.mxu0 %v1476
    %v1546 = vpop.f32.mrf.mxu0
    %v1547 = vadd.f32 0.0, %v1546
    %v1548 = vpop.f32.mrf.mxu0
    %1549 = vdwg.mxu0
    %v1550 = vsel %vm160, %v1469, -inf
    %1551 = vmax.xlane.f32.xlu0 %v1550
    %v1552 = vpop.xlane.xlu0 %1551
    %v1553 = vsel %vm160, %v1547, -inf
    %1554 = vmax.xlane.f32.xlu0 %v1553
    %v1555 = vpop.xlane.xlu0 %1554
    %v1556 = vsub.f32 %v1469, %v1552
    %v1557 = vsub.f32 %v1547, %v1555
    %v1558 = vmul.f32 %v1556, 1.442695
    %v1559 = vpow.pop %v1558
    %v1560 = vmul.f32 %v1557, 1.442695
    %v1561 = vpow.pop %v1560
    %v1562 = vsel %vm160, %v1559, 0.0
    %1563 = vadd.xlane.f32.xlu0 %v1562
    %v1564 = vpop.xlane.xlu0 %1563
    %v1565 = vsel %vm160, %v1561, 0.0
    %1566 = vadd.xlane.f32.xlu0 %v1565
    %v1567 = vpop.xlane.xlu0 %1566
    %v1568 = vrcp.pop %v1564
    %v1569 = vmul.f32 %v1559, %v1568
    %v1570 = vrcp.pop %v1567
    %v1571 = vmul.f32 %v1561, %v1570
    %1572 = vrot.lane.b32.xlu0 %v149, 40
    %v1573 = vpop.permute.xlu0 %1572
    %v1576 = vsel %vm160, %v1569, 0
    %1578 = vmatprep.subr.mxu0 0.0
    %1579 = vmatpush1.msra.mxu0 0.0
    %1580 = vmatprep.subr.mxu0 0.0
    %1581 = vmatpush1.msra.mxu0 0.0
    %1582 = vmatprep.subr.mxu0 0.0
    %1583 = vmatpush1.msra.mxu0 0.0
    %1584 = vmatprep.subr.mxu0 0.0
    %1585 = vmatpush1.msra.mxu0 0.0
    %1586 = vmatprep.subr.mxu0 0.0
    %1587 = vmatpush1.msra.mxu0 0.0
    %1588 = vmatprep.subr.mxu0 0.0
    %1589 = vmatpush1.msra.mxu0 0.0
    %1590 = vmatprep.subr.mxu0 0.0
    %1591 = vmatpush1.msra.mxu0 0.0
    %1592 = vmatprep.subr.mxu0 0.0
    %1593 = vmatpush1.msra.mxu0 0.0
    %1594 = vmatprep.subr.mxu0 0.0
    %1595 = vmatpush1.msra.mxu0 0.0
    %1596 = vmatprep.subr.mxu0 0.0
    %1597 = vmatpush1.msra.mxu0 0.0
    %1598 = vmatprep.subr.mxu0 0.0
    %1599 = vmatpush1.msra.mxu0 0.0
    %1600 = vmatprep.subr.mxu0 0.0
    %1601 = vmatpush1.msra.mxu0 0.0
    %1602 = vmatprep.subr.mxu0 0.0
    %1603 = vmatpush1.msra.mxu0 0.0
    %1604 = vmatprep.subr.mxu0 0.0
    %1605 = vmatpush1.msra.mxu0 0.0
    %1606 = vmatprep.subr.mxu0 0.0
    %1607 = vmatpush1.msra.mxu0 0.0
    %1608 = vmatprep.subr.mxu0 0.0
    %1609 = vmatpush1.msra.mxu0 %v1573
    %1610 = vmatprep.subr.mxu0 0.0
    %1611 = vmatpush2.msra.mxu0 0.0
    %1612 = vmatprep.subr.mxu0 0.0
    %1613 = vmatpush2.msra.mxu0 0.0
    %1614 = vmatprep.subr.mxu0 0.0
    %1615 = vmatpush2.msra.mxu0 0.0
    %1616 = vmatprep.subr.mxu0 0.0
    %1617 = vmatpush2.msra.mxu0 0.0
    %1618 = vmatprep.subr.mxu0 0.0
    %1619 = vmatpush2.msra.mxu0 0.0
    %1620 = vmatprep.subr.mxu0 0.0
    %1621 = vmatpush2.msra.mxu0 0.0
    %1622 = vmatprep.subr.mxu0 0.0
    %1623 = vmatpush2.msra.mxu0 0.0
    %1624 = vmatprep.subr.mxu0 0.0
    %1625 = vmatpush2.msra.mxu0 0.0
    %1626 = vmatprep.subr.mxu0 0.0
    %1627 = vmatpush2.msra.mxu0 0.0
    %1628 = vmatprep.subr.mxu0 0.0
    %1629 = vmatpush2.msra.mxu0 0.0
    %1630 = vmatprep.subr.mxu0 0.0
    %1631 = vmatpush2.msra.mxu0 0.0
    %1632 = vmatprep.subr.mxu0 0.0
    %1633 = vmatpush2.msra.mxu0 0.0
    %1634 = vmatprep.subr.mxu0 0.0
    %1635 = vmatpush2.msra.mxu0 0.0
    %1636 = vmatprep.subr.mxu0 0.0
    %1637 = vmatpush2.msra.mxu0 0.0
    %1638 = vmatprep.subr.mxu0 0.0
    %1639 = vmatpush2.msra.mxu0 0.0
    %1640 = vmatprep.subr.mxu0 0.0
    %1641 = vmatpush2.msra.mxu0 0.0
    %1642 = vmatprep.mubr.f32.mxu0 0.0
    %1643 = vmatmul.mubr.f32.gmra.mxu0 %v1576
    %v1644 = vpop.f32.mrf.mxu0
    %v1645 = vadd.f32 0.0, %v1644
    %v1646 = vpop.f32.mrf.mxu0
    %1647 = vdwg.mxu0
    %1648 = vrot.lane.b32.xlu0 %v154, 40
    %v1649 = vpop.permute.xlu0 %1648
    %v1652 = vsel %vm160, %v1571, 0
    %1654 = vmatprep.subr.mxu0 0.0
    %1655 = vmatpush1.msra.mxu0 0.0
    %1656 = vmatprep.subr.mxu0 0.0
    %1657 = vmatpush1.msra.mxu0 0.0
    %1658 = vmatprep.subr.mxu0 0.0
    %1659 = vmatpush1.msra.mxu0 0.0
    %1660 = vmatprep.subr.mxu0 0.0
    %1661 = vmatpush1.msra.mxu0 0.0
    %1662 = vmatprep.subr.mxu0 0.0
    %1663 = vmatpush1.msra.mxu0 0.0
    %1664 = vmatprep.subr.mxu0 0.0
    %1665 = vmatpush1.msra.mxu0 0.0
    %1666 = vmatprep.subr.mxu0 0.0
    %1667 = vmatpush1.msra.mxu0 0.0
    %1668 = vmatprep.subr.mxu0 0.0
    %1669 = vmatpush1.msra.mxu0 0.0
    %1670 = vmatprep.subr.mxu0 0.0
    %1671 = vmatpush1.msra.mxu0 0.0
    %1672 = vmatprep.subr.mxu0 0.0
    %1673 = vmatpush1.msra.mxu0 0.0
    %1674 = vmatprep.subr.mxu0 0.0
    %1675 = vmatpush1.msra.mxu0 0.0
    %1676 = vmatprep.subr.mxu0 0.0
    %1677 = vmatpush1.msra.mxu0 0.0
    %1678 = vmatprep.subr.mxu0 0.0
    %1679 = vmatpush1.msra.mxu0 0.0
    %1680 = vmatprep.subr.mxu0 0.0
    %1681 = vmatpush1.msra.mxu0 0.0
    %1682 = vmatprep.subr.mxu0 0.0
    %1683 = vmatpush1.msra.mxu0 0.0
    %1684 = vmatprep.subr.mxu0 0.0
    %1685 = vmatpush1.msra.mxu0 %v1649
    %1686 = vmatprep.subr.mxu0 0.0
    %1687 = vmatpush2.msra.mxu0 0.0
    %1688 = vmatprep.subr.mxu0 0.0
    %1689 = vmatpush2.msra.mxu0 0.0
    %1690 = vmatprep.subr.mxu0 0.0
    %1691 = vmatpush2.msra.mxu0 0.0
    %1692 = vmatprep.subr.mxu0 0.0
    %1693 = vmatpush2.msra.mxu0 0.0
    %1694 = vmatprep.subr.mxu0 0.0
    %1695 = vmatpush2.msra.mxu0 0.0
    %1696 = vmatprep.subr.mxu0 0.0
    %1697 = vmatpush2.msra.mxu0 0.0
    %1698 = vmatprep.subr.mxu0 0.0
    %1699 = vmatpush2.msra.mxu0 0.0
    %1700 = vmatprep.subr.mxu0 0.0
    %1701 = vmatpush2.msra.mxu0 0.0
    %1702 = vmatprep.subr.mxu0 0.0
    %1703 = vmatpush2.msra.mxu0 0.0
    %1704 = vmatprep.subr.mxu0 0.0
    %1705 = vmatpush2.msra.mxu0 0.0
    %1706 = vmatprep.subr.mxu0 0.0
    %1707 = vmatpush2.msra.mxu0 0.0
    %1708 = vmatprep.subr.mxu0 0.0
    %1709 = vmatpush2.msra.mxu0 0.0
    %1710 = vmatprep.subr.mxu0 0.0
    %1711 = vmatpush2.msra.mxu0 0.0
    %1712 = vmatprep.subr.mxu0 0.0
    %1713 = vmatpush2.msra.mxu0 0.0
    %1714 = vmatprep.subr.mxu0 0.0
    %1715 = vmatpush2.msra.mxu0 0.0
    %1716 = vmatprep.subr.mxu0 0.0
    %1717 = vmatpush2.msra.mxu0 0.0
    %1718 = vmatprep.mubr.f32.mxu0 0.0
    %1719 = vmatmul.mubr.f32.gmra.mxu0 %v1652
    %v1720 = vpop.f32.mrf.mxu0
    %v1721 = vadd.f32 0.0, %v1720
    %v1722 = vpop.f32.mrf.mxu0
    %1723 = vdwg.mxu0
    %v1724 = vld [vmem:[#allocation7 + $0x18] sm:$0xff]
    %v1726 = vsel %vm160, %v1645, 0
    %v1729 = vsel %vm160, %v1721, 0
    %1731 = vmatprep.subr.mxu0 0.0
    %1732 = vmatpush1.msra.mxu0 0.0
    %1733 = vmatprep.subr.mxu0 0.0
    %1734 = vmatpush1.msra.mxu0 0.0
    %1735 = vmatprep.subr.mxu0 0.0
    %1736 = vmatpush1.msra.mxu0 0.0
    %1737 = vmatprep.subr.mxu0 0.0
    %1738 = vmatpush1.msra.mxu0 0.0
    %1739 = vmatprep.subr.mxu0 0.0
    %1740 = vmatpush1.msra.mxu0 0.0
    %1741 = vmatprep.subr.mxu0 0.0
    %1742 = vmatpush1.msra.mxu0 0.0
    %1743 = vmatprep.subr.mxu0 0.0
    %1744 = vmatpush1.msra.mxu0 0.0
    %1745 = vmatprep.subr.mxu0 0.0
    %1746 = vmatpush1.msra.mxu0 0.0
    %1747 = vmatprep.subr.mxu0 0.0
    %1748 = vmatpush1.msra.mxu0 0.0
    %1749 = vmatprep.subr.mxu0 0.0
    %1750 = vmatpush1.msra.mxu0 0.0
    %1751 = vmatprep.subr.mxu0 0.0
    %1752 = vmatpush1.msra.mxu0 0.0
    %1753 = vmatprep.subr.mxu0 0.0
    %1754 = vmatpush1.msra.mxu0 0.0
    %1755 = vmatprep.subr.mxu0 0.0
    %1756 = vmatpush1.msra.mxu0 0.0
    %1757 = vmatprep.subr.mxu0 0.0
    %1758 = vmatpush1.msra.mxu0 0.0
    %1759 = vmatprep.subr.mxu0 0.0
    %1760 = vmatpush1.msra.mxu0 0.0
    %1761 = vmatprep.subr.mxu0 0.0
    %1762 = vmatpush1.msra.mxu0 %v1724
    %1763 = vmatprep.subr.mxu0 0.0
    %1764 = vmatpush2.msra.mxu0 0.0
    %1765 = vmatprep.subr.mxu0 0.0
    %1766 = vmatpush2.msra.mxu0 0.0
    %1767 = vmatprep.subr.mxu0 0.0
    %1768 = vmatpush2.msra.mxu0 0.0
    %1769 = vmatprep.subr.mxu0 0.0
    %1770 = vmatpush2.msra.mxu0 0.0
    %1771 = vmatprep.subr.mxu0 0.0
    %1772 = vmatpush2.msra.mxu0 0.0
    %1773 = vmatprep.subr.mxu0 0.0
    %1774 = vmatpush2.msra.mxu0 0.0
    %1775 = vmatprep.subr.mxu0 0.0
    %1776 = vmatpush2.msra.mxu0 0.0
    %1777 = vmatprep.subr.mxu0 0.0
    %1778 = vmatpush2.msra.mxu0 0.0
    %1779 = vmatprep.subr.mxu0 0.0
    %1780 = vmatpush2.msra.mxu0 0.0
    %1781 = vmatprep.subr.mxu0 0.0
    %1782 = vmatpush2.msra.mxu0 0.0
    %1783 = vmatprep.subr.mxu0 0.0
    %1784 = vmatpush2.msra.mxu0 0.0
    %1785 = vmatprep.subr.mxu0 0.0
    %1786 = vmatpush2.msra.mxu0 0.0
    %1787 = vmatprep.subr.mxu0 0.0
    %1788 = vmatpush2.msra.mxu0 0.0
    %1789 = vmatprep.subr.mxu0 0.0
    %1790 = vmatpush2.msra.mxu0 0.0
    %1791 = vmatprep.subr.mxu0 0.0
    %1792 = vmatpush2.msra.mxu0 0.0
    %1793 = vmatprep.subr.mxu0 0.0
    %1794 = vmatpush2.msra.mxu0 0.0
    %1795 = vmatprep.mubr.f32.mxu0 0.0
    %1796 = vmatmul.mubr.f32.gmra.mxu0 %v1726
    %v1797 = vpop.f32.mrf.mxu0
    %v1798 = vadd.f32 0.0, %v1797
    %v1799 = vpop.f32.mrf.mxu0
    %1800 = vmatprep.mubr.f32.mxu0 0.0
    %1801 = vmatmul.mubr.f32.gmra.mxu0 %v1729
    %v1802 = vpop.f32.mrf.mxu0
    %v1803 = vadd.f32 0.0, %v1802
    %v1804 = vpop.f32.mrf.mxu0
    %1805 = vdwg.mxu0
    %v1806 = vadd.f32 %v1392, %v1798
    %v1807 = vadd.f32 %v1393, %v1803
    %v1808 = vld [vmem:[%s4] sm:$0x1]
    %v1810 = vlaneseq
    %v1811 = vshrl.u32 %v1810, 7
    %v1812 = vsub.s32 0, %v1811
    %v1813 = vrot.slane %v1808, %v1812
    %v1815 = vadd.f32 %v1806, %v1813
    %v1816 = vadd.f32 %v1807, %v1813
    %1817 = vst.msk [vmem:[#allocation8] sm:$0xff] %vm75, %v1815
    %1818 = vst.msk [vmem:[#allocation8 + $0x8] sm:$0xff] %vm75, %v1816
    // Predicated region
    $region34: #{tpu_custom_call.1} parent=1 // pred_check
      _
    $region35: #{tpu_custom_call.1} parent=1 // pred_check_branch
      %1820 = sbr.rel (0) target = $region37
    $region36: #{tpu_custom_call.1} parent=1 // pred_region
      %s1822 = ssub.s32 256, 256
      %1823 = vsyncadd [#allocation4], %s1822
      %s1824 = sshll.u32 [#allocation8], 4
      %s1825 = int_to_ptr.vmem [resolvable:$true] %s1824
      %1830 = dma.vmem_to_hbm [thread:$0]  %s1825, 256, %s5, [#allocation4], 128, 128, 8
    $region37: #{tpu_custom_call.1} parent=1 // pred_fallthru
      _
    // Predicated region
    $region38: #{tpu_custom_call.1} parent=1 // pred_check
      _
    $region39: #{tpu_custom_call.1} parent=1 // pred_check_branch
      %1832 = sbr.rel (0) target = $region41
    $region40: #{tpu_custom_call.1} parent=1 // pred_region
      %1833 = dma.done [#allocation4], 256
    $region41: #{tpu_custom_call.1} parent=1 // pred_fallthru
      _
    %1834 = vsyncpa [#allocation3], 1
    %1835 = vsyncpa [#allocation6], 1
    %1836 = vsyncpa [#allocation4], 1

</llo_original>
